<compile_context>
chip_gen: v7x
topology: tpu7x:2x2x1
jax: 0.10.0
libtpu: 0.0.40
codegen_flags: <defaults>
</compile_context>

<pallas_src>
import functools

import jax
import jax.numpy as jnp
from jax.experimental import pallas as pl
from jax.experimental.pallas import tpu as pltpu


def _chamfer_kernel(x_ref, y_ref, ls_ref, d1_ref, d2_ref):
    """One (batch-group, i-tile, j-tile) step of the tiled Chamfer distance.

    x_ref: (1, Bt, K, Ti)  augmented x tile  [-2*x ; ||x||^2 ; 1]
    y_ref: (1, Bt, K, Tj)  augmented y tile  [  y  ;    1    ; ||y||^2]
    ls_ref: (1, Bt, Np)    per-point (d1 + d2)/2, written on the last (i,j) step
    d1_ref, d2_ref: (Bt, Np) VMEM running-min accumulators
    """
    i = pl.program_id(1)
    j = pl.program_id(2)

    @pl.when(jnp.logical_and(i == 0, j == 0))
    def _init():
        d1_ref[...] = jnp.full(d1_ref.shape, jnp.inf, d1_ref.dtype)
        d2_ref[...] = jnp.full(d2_ref.shape, jnp.inf, d2_ref.dtype)

    xa = x_ref[0]                                    # (Bt, K, Ti)
    ya = y_ref[0]                                    # (Bt, K, Tj)

    # t[b, p, q] = ||x_p||^2 - 2 x_p.y_q + ||y_q||^2 in a single MXU pass over
    # the augmented K = C+2 axis (trans-A handled by dimension_numbers, no
    # materialized (N, C) transpose, no N^2 epilogue adds).
    t = jax.lax.dot_general(
        xa, ya,
        dimension_numbers=(((1,), (1,)), ((0,), (0,))),
        preferred_element_type=jnp.float32)          # (Bt, Ti, Tj)

    ti = xa.shape[2]
    tj = ya.shape[2]
    i0 = pl.multiple_of(i * ti, ti)
    j0 = pl.multiple_of(j * tj, tj)

    # d2[b, p] = min_q t  (lane/XLU reduce), accumulated over j tiles.
    # TODO(synk): if a bundle dump shows the XLU as the saturating slot, trade
    # this cross-lane min for a second K<=8 matmul with x/y roles swapped.
    d2_ref[:, pl.ds(i0, ti)] = jnp.minimum(d2_ref[:, pl.ds(i0, ti)],
                                           jnp.min(t, axis=2))
    # d1[b, q] = min_p t  (sublane reduce), accumulated over i tiles.
    d1_ref[:, pl.ds(j0, tj)] = jnp.minimum(d1_ref[:, pl.ds(j0, tj)],
                                           jnp.min(t, axis=1))

    @pl.when(jnp.logical_and(i == pl.num_programs(1) - 1,
                             j == pl.num_programs(2) - 1))
    def _finalize():
        ls_ref[0] = (0.5 * (d1_ref[...] + d2_ref[...])).astype(ls_ref.dtype)


def _vmem_capacity_bytes():
    try:
        return int(pltpu.get_tpu_info().vmem_capacity_bytes)
    except Exception:
        return 64 * 1024 * 1024          # conservative (v7x-class per-core VMEM)


def _is_multi_tensorcore():
    """Best-effort: does one device expose >1 TensorCore (v4/v5p megacore, v7x)?"""
    try:
        kind = jax.devices()[0].device_kind.lower()
    except Exception:
        return False
    return any(tag in kind for tag in ("v4", "v5p", "v7"))


def _vmem_step_bytes(bt, k, ti, tj, n_pad):
    f32 = 4
    k_pad = ((k + 7) // 8) * 8                      # sublane padding of K rows
    in_bytes = 2 * bt * k_pad * (ti + tj) * f32     # double-buffered input tiles
    out_bytes = 2 * bt * n_pad * f32                # double-buffered output block
    scratch = 2 * bt * n_pad * f32                  # d1/d2 accumulators
    work = 3 * bt * ti * tj * f32                   # t tile + min temporaries
    return in_bytes + out_bytes + scratch + work


def _pick_tiling(batch, k, n_pad):
    """Choose (Bt, Ti=Tj, vmem_limit_bytes) so the per-step working set fits."""
    capacity = _vmem_capacity_bytes()
    vmem_limit = max(32 * 1024 * 1024, int(0.8 * capacity))   # ~20% headroom
    budget = int(0.7 * vmem_limit)                            # Mosaic scratch slack

    bt_cap = batch
    if _is_multi_tensorcore() and batch >= 2:
        # Keep >= 2 "parallel" batch groups so both TensorCores get work.
        bt_cap = max(1, batch // 2)
    # TODO(synk): for batch == 1 on a 2-TC part, also split the i axis into a
    # parallel grid dimension (needs a cross-group min of partial d1 in glue).
    bt_cands = [d for d in range(bt_cap, 0, -1) if batch % d == 0]

    for tile_cap in (2048, 1024, 512, 256, 128):
        tile = None
        for t in range(min(n_pad, tile_cap), 0, -128):
            if n_pad % t == 0:
                tile = t
                break
        if tile is None:
            continue
        for bt in bt_cands:
            if _vmem_step_bytes(bt, k, tile, tile, n_pad) <= budget:
                return bt, tile, vmem_limit

    raise ValueError(
        "ChamferLoss Pallas kernel: no (batch_tile, point_tile) combination "
        f"fits in {budget} bytes of VMEM (batch={batch}, K={k}, N_pad={n_pad}).")


def chamfer_loss(x, y, ps=None):
    """x, y: (batch, C, N). Returns the scalar Chamfer loss (torch semantics)."""
    assert x.shape == y.shape, "reference semantics require N_x == N_y == ps"
    batch, c, n = x.shape
    if ps is not None:
        assert ps == n, "ps must equal the number of points (last axis)"

    xf = x.astype(jnp.float32)
    yf = y.astype(jnp.float32)

    # Augmented operands: one K = C+2 contraction yields
    #   t[b,i,j] = ||x_i||^2 - 2 x_i.y_j + ||y_j||^2
    # directly on the MXU. O(C*N) prep here is negligible vs the O(N^2) kernel.
    rx = jnp.sum(xf * xf, axis=1, keepdims=True)              # (B, 1, N)
    ry = jnp.sum(yf * yf, axis=1, keepdims=True)              # (B, 1, N)
    ones = jnp.ones_like(rx)
    x_aug = jnp.concatenate([-2.0 * xf, rx, ones], axis=1)    # (B, K, N)
    y_aug = jnp.concatenate([yf, ones, ry], axis=1)           # (B, K, N)
    k = c + 2

    # Lane-dense padding: padded points get a huge augmented squared norm so
    # they never win either min ("ones" rows pad with 0 -> cross terms vanish);
    # padded outputs are sliced off before the mean.
    n_pad = ((n + 127) // 128) * 128
    if n_pad != n:
        big = jnp.float32(1e30)
        x_aug = jnp.pad(x_aug, ((0, 0), (0, 0), (0, n_pad - n)))
        y_aug = jnp.pad(y_aug, ((0, 0), (0, 0), (0, n_pad - n)))
        x_aug = x_aug.at[:, c, n:].set(big)        # ||x||^2 row
        y_aug = y_aug.at[:, c + 1, n:].set(big)    # ||y||^2 row

    bt, tile, vmem_limit = _pick_tiling(batch, k, n_pad)
    g = batch // bt
    steps = n_pad // tile

    xr = x_aug.reshape(g, bt, k, n_pad)
    yr = y_aug.reshape(g, bt, k, n_pad)

    ls = pl.pallas_call(
        _chamfer_kernel,
        out_shape=jax.ShapeDtypeStruct((g, bt, n_pad), jnp.float32),
        grid_spec=pltpu.PrefetchScalarGridSpec(
            num_scalar_prefetch=0,
            grid=(g, steps, steps),
            in_specs=[
                pl.BlockSpec((1, bt, k, tile), lambda b, i, j: (b, 0, 0, i)),
                pl.BlockSpec((1, bt, k, tile), lambda b, i, j: (b, 0, 0, j)),
            ],
            out_specs=pl.BlockSpec((1, bt, n_pad), lambda b, i, j: (b, 0, 0)),
            scratch_shapes=[
                pltpu.VMEM((bt, n_pad), jnp.float32),   # d1 running min (over i)
                pltpu.VMEM((bt, n_pad), jnp.float32),   # d2 running min (over j)
            ],
        ),
        compiler_params=pltpu.CompilerParams(
            dimension_semantics=("parallel", "arbitrary", "arbitrary"),
            vmem_limit_bytes=vmem_limit,
        ),
        cost_estimate=pl.CostEstimate(
            flops=2 * batch * n_pad * n_pad * k,
            transcendentals=0,
            bytes_accessed=(2 * batch * k * n_pad + batch * n_pad) * 4,
        ),
    )(xr, yr)

    ls = ls.reshape(batch, n_pad)
    if n_pad != n:
        ls = ls[:, :n]                 # exclude padded points from the mean
    return jnp.mean(ls)


def _chamfer_ref(x, y):
    """Pure-JAX reference mirroring the PyTorch code."""
    a = jnp.transpose(x, (0, 2, 1))                      # (B, N, C)
    b = jnp.transpose(y, (0, 2, 1))                      # (B, N, C)
    r = jnp.sum(a * a, axis=2)[..., None]                # (B, N, 1)
    r1 = jnp.sum(b * b, axis=2)[..., None]               # (B, N, 1)
    t = r - 2.0 * jnp.einsum("bic,bjc->bij", a, b) + jnp.transpose(r1, (0, 2, 1))
    d1 = jnp.min(t, axis=1)
    d2 = jnp.min(t, axis=2)
    return jnp.mean((d1 + d2) / 2.0)


if __name__ == "__main__":
    key = jax.random.PRNGKey(0)
    kx, ky = jax.random.split(key)

    batch, c, n = 4, 3, 91          # (batch, coords, points); ps == n == 91
    x = jax.random.normal(kx, (batch, c, n), dtype=jnp.float32)
    y = jax.random.normal(ky, (batch, c, n), dtype=jnp.float32)

    loss_fn = jax.jit(functools.partial(chamfer_loss, ps=n))
    loss = jax.block_until_ready(loss_fn(x, y))

    ref = _chamfer_ref(x, y)
    assert jnp.allclose(loss, ref, rtol=1e-4, atol=1e-5), (loss, ref)

    print("KERNEL_OK")
</pallas_src>

<mosaic_0001>
module attributes {stable_mosaic.version = 11 : i64} {
  func.func @_chamfer_kernel(%arg0: i32, %arg1: i32, %arg2: i32, %arg3: memref<1x4x5x128xf32, #tpu.memory_space<vmem>>, %arg4: memref<1x4x5x128xf32, #tpu.memory_space<vmem>>, %arg5: memref<1x4x128xf32, #tpu.memory_space<vmem>>, %arg6: memref<4x128xf32, #tpu.memory_space<vmem>>, %arg7: memref<4x128xf32, #tpu.memory_space<vmem>>) attributes {dimension_semantics = [#tpu.dimension_semantics<parallel>, #tpu.dimension_semantics<arbitrary>, #tpu.dimension_semantics<arbitrary>], iteration_bounds = array<i64: 1, 1, 1>, scalar_prefetch = 0 : i64, scratch_operands = 2 : i64, tpu.core_type = #tpu.core_type<tc>, window_params = [{transform_indices = @transform_0, window_bounds = array<i64: 1, 4, 5, 128>}, {transform_indices = @transform_1, window_bounds = array<i64: 1, 4, 5, 128>}, {transform_indices = @transform_2, window_bounds = array<i64: 1, 4, 128>}]} {
    %c0_i32 = arith.constant 0 : i32
    %0 = arith.cmpi eq, %arg1, %c0_i32 : i32
    %c0_i32_0 = arith.constant 0 : i32
    %1 = arith.cmpi eq, %arg2, %c0_i32_0 : i32
    %2 = arith.andi %0, %1 : i1
    %3 = arith.extui %2 : i1 to i32
    %c0_i32_1 = arith.constant 0 : i32
    %4 = arith.cmpi ne, %3, %c0_i32_1 : i32
    scf.if %4 {
      %cst_19 = arith.constant 0x7F800000 : f32
      %31 = vector.broadcast %cst_19 : f32 to vector<4x128xf32>
      %c0_20 = arith.constant 0 : index
      %c0_21 = arith.constant 0 : index
      %32 = vector.load %arg6[%c0_20, %c0_21] : memref<4x128xf32, #tpu.memory_space<vmem>>, vector<4x128xf32>
      tpu.vector_store %arg6[%c0_20, %c0_21], %31 {strides = array<i32>} : memref<4x128xf32, #tpu.memory_space<vmem>>, vector<4x128xf32>,
      %cst_22 = arith.constant 0x7F800000 : f32
      %33 = vector.broadcast %cst_22 : f32 to vector<4x128xf32>
      %c0_23 = arith.constant 0 : index
      %c0_24 = arith.constant 0 : index
      %34 = vector.load %arg7[%c0_23, %c0_24] : memref<4x128xf32, #tpu.memory_space<vmem>>, vector<4x128xf32>
      tpu.vector_store %arg7[%c0_23, %c0_24], %33 {strides = array<i32>} : memref<4x128xf32, #tpu.memory_space<vmem>>, vector<4x128xf32>,
    } else {
    }
    %c0 = arith.constant 0 : index
    %c0_2 = arith.constant 0 : index
    %c0_3 = arith.constant 0 : index
    %c0_4 = arith.constant 0 : index
    %5 = vector.load %arg3[%c0, %c0_2, %c0_3, %c0_4] : memref<1x4x5x128xf32, #tpu.memory_space<vmem>>, vector<1x4x5x128xf32>
    %6 = vector.shape_cast %5 : vector<1x4x5x128xf32> to vector<4x5x128xf32>
    %c0_5 = arith.constant 0 : index
    %c0_6 = arith.constant 0 : index
    %c0_7 = arith.constant 0 : index
    %c0_8 = arith.constant 0 : index
    %7 = vector.load %arg4[%c0_5, %c0_6, %c0_7, %c0_8] : memref<1x4x5x128xf32, #tpu.memory_space<vmem>>, vector<1x4x5x128xf32>
    %8 = vector.shape_cast %7 : vector<1x4x5x128xf32> to vector<4x5x128xf32>
    %cst = arith.constant dense<0.000000e+00> : vector<4x128x128xf32>
    %9 = tpu.matmul %6, %8, %cst {dimension_numbers = #tpu.dot_dimension_numbers<[1], [1], [2], [2], [0, 0, 0, 2, 1, 2], [0], [0]>} : vector<4x5x128xf32>, vector<4x5x128xf32>, vector<4x128x128xf32> -> vector<4x128x128xf32>
    %c128_i32 = arith.constant 128 : i32
    %10 = arith.muli %arg1, %c128_i32 : i32
    %11 = tpu.assume_multiple %10, 128 : i32
    %c128_i32_9 = arith.constant 128 : i32
    %12 = arith.muli %arg2, %c128_i32_9 : i32
    %13 = tpu.assume_multiple %12, 128 : i32
    %c0_10 = arith.constant 0 : index
    %14 = arith.index_cast %11 : i32 to index
    %15 = vector.load %arg7[%c0_10, %14] : memref<4x128xf32, #tpu.memory_space<vmem>>, vector<4x128xf32>
    %cst_11 = arith.constant dense<0x7F800000> : vector<4x128xf32>
    %16 = vector.multi_reduction <minimumf>, %9, %cst_11 [2] : vector<4x128x128xf32> to vector<4x128xf32>
    %17 = arith.minimumf %15, %16 : vector<4x128xf32>
    %c0_12 = arith.constant 0 : index
    %18 = arith.index_cast %11 : i32 to index
    %19 = vector.load %arg7[%c0_12, %18] : memref<4x128xf32, #tpu.memory_space<vmem>>, vector<4x128xf32>
    tpu.vector_store %arg7[%c0_12, %18], %17 {strides = array<i32>} : memref<4x128xf32, #tpu.memory_space<vmem>>, vector<4x128xf32>,
    %c0_13 = arith.constant 0 : index
    %20 = arith.index_cast %13 : i32 to index
    %21 = vector.load %arg6[%c0_13, %20] : memref<4x128xf32, #tpu.memory_space<vmem>>, vector<4x128xf32>
    %cst_14 = arith.constant dense<0x7F800000> : vector<4x128xf32>
    %22 = vector.multi_reduction <minimumf>, %9, %cst_14 [1] : vector<4x128x128xf32> to vector<4x128xf32>
    %23 = arith.minimumf %21, %22 : vector<4x128xf32>
    %c0_15 = arith.constant 0 : index
    %24 = arith.index_cast %13 : i32 to index
    %25 = vector.load %arg6[%c0_15, %24] : memref<4x128xf32, #tpu.memory_space<vmem>>, vector<4x128xf32>
    tpu.vector_store %arg6[%c0_15, %24], %23 {strides = array<i32>} : memref<4x128xf32, #tpu.memory_space<vmem>>, vector<4x128xf32>,
    %c0_i32_16 = arith.constant 0 : i32
    %26 = arith.cmpi eq, %arg1, %c0_i32_16 : i32
    %c0_i32_17 = arith.constant 0 : i32
    %27 = arith.cmpi eq, %arg2, %c0_i32_17 : i32
    %28 = arith.andi %26, %27 : i1
    %29 = arith.extui %28 : i1 to i32
    %c0_i32_18 = arith.constant 0 : i32
    %30 = arith.cmpi ne, %29, %c0_i32_18 : i32
    scf.if %30 {
      %c0_19 = arith.constant 0 : index
      %c0_20 = arith.constant 0 : index
      %31 = vector.load %arg6[%c0_19, %c0_20] : memref<4x128xf32, #tpu.memory_space<vmem>>, vector<4x128xf32>
      %c0_21 = arith.constant 0 : index
      %c0_22 = arith.constant 0 : index
      %32 = vector.load %arg7[%c0_21, %c0_22] : memref<4x128xf32, #tpu.memory_space<vmem>>, vector<4x128xf32>
      %33 = arith.addf %31, %32 : vector<4x128xf32>
      %cst_23 = arith.constant 5.000000e-01 : f32
      %34 = vector.broadcast %cst_23 : f32 to vector<4x128xf32>
      %35 = arith.mulf %34, %33 : vector<4x128xf32>
      %c0_24 = arith.constant 0 : index
      %c0_25 = arith.constant 0 : index
      %c0_26 = arith.constant 0 : index
      %36 = vector.load %arg5[%c0_24, %c0_25, %c0_26] : memref<1x4x128xf32, #tpu.memory_space<vmem>>, vector<1x4x128xf32>
      %37 = vector.shape_cast %36 : vector<1x4x128xf32> to vector<4x128xf32>
      %38 = vector.shape_cast %35 : vector<4x128xf32> to vector<1x4x128xf32>
      tpu.vector_store %arg5[%c0_24, %c0_25, %c0_26], %38 {strides = array<i32>} : memref<1x4x128xf32, #tpu.memory_space<vmem>>, vector<1x4x128xf32>,
    } else {
    }
    return
  }
  func.func @transform_0(%arg0: i32, %arg1: i32, %arg2: i32) -> (i32, i32, i32, i32) {
    %c0_i32 = arith.constant 0 : i32
    %c0_i32_0 = arith.constant 0 : i32
    %c0_i32_1 = arith.constant 0 : i32
    return %arg0, %c0_i32, %c0_i32_0, %arg1 : i32, i32, i32, i32
  }
  func.func @transform_1(%arg0: i32, %arg1: i32, %arg2: i32) -> (i32, i32, i32, i32) {
    %c0_i32 = arith.constant 0 : i32
    %c0_i32_0 = arith.constant 0 : i32
    %c0_i32_1 = arith.constant 0 : i32
    return %arg0, %c0_i32, %c0_i32_0, %arg2 : i32, i32, i32, i32
  }
  func.func @transform_2(%arg0: i32, %arg1: i32, %arg2: i32) -> (i32, i32, i32) {
    %c0_i32 = arith.constant 0 : i32
    %c0_i32_0 = arith.constant 0 : i32
    %c0_i32_1 = arith.constant 0 : i32
    return %arg0, %c0_i32, %c0_i32_0 : i32, i32, i32
  }
}

</mosaic_0001>

<llo_original>
// kernel: chamfer_loss.1
$region0: #{chamfer_loss.1}
  #allocation0 [shape = 'u32[]', space=smem, size = 0x4, offset = 0x4, fixed_abs, tag = 'smem constant byte address 0x4 - core index']
  #allocation1 [shape = 'u32[144,128]{1,0:T(1,128)}', space=vmem, size = 0x12000, scoped, tag = 'internal scratch']
  #allocation2 [shape = 'f32[4,128]{1,0:T(4,128)}', space=vmem, size = 0x800, scoped, tag = 'scratch operand']
  #allocation3 [shape = 'f32[4,128]{1,0:T(4,128)}', space=vmem, size = 0x800, scoped, tag = 'scratch operand']
  %s0 = inlined_call_operand.vmem [shape: f32[1,4,5,128], index: 0, kind: input, shape index: {}]
  %s1 = inlined_call_operand.vmem [shape: f32[1,4,5,128], index: 1, kind: input, shape index: {}]
  %s2 = inlined_call_operand.vmem [shape: f32[1,4,128], index: 2, kind: output, shape index: {}]
  %s3 = sld [smem:[#allocation0]]
  $region26: #{chamfer_loss.1} parent=0
    _
  %s5 = ssub.s32 1, %s3
  %s6 = scalar_select 0, %s5, %s3
  // Predicated region
  $region2: #{chamfer_loss.1} parent=0 // pred_check
    _
  $region3: #{chamfer_loss.1} parent=0 // pred_check_branch
    %8 = sbr.rel (0) target = $region5
  $region4: #{chamfer_loss.1} parent=0 // pred_region
    _
  $region5: #{chamfer_loss.1} parent=0 // pred_fallthru
    _
  // Predicated region
  $region6: #{chamfer_loss.1} parent=0 // pred_check
    _
  $region7: #{chamfer_loss.1} parent=0 // pred_check_branch
    %10 = sbr.rel (0) target = $region9
  $region8: #{chamfer_loss.1} parent=0 // pred_region
    _
  $region9: #{chamfer_loss.1} parent=0 // pred_fallthru
    _
  %p11 = scmp.eq.s32.totalorder 0, 0
  %p12 = scmp.eq.s32.totalorder 0, 0
  %p13 = pnand %p11, %p12
  %p14 = pneg %p13
  // Predicated region
  $region10: #{chamfer_loss.1} parent=0 // pred_check
    _
  $region11: #{chamfer_loss.1} parent=0 // pred_check_branch
    %16 = sbr.rel (%p13) target = $region13
  $region12: #{chamfer_loss.1} parent=0 // pred_region
    %17 = vst [vmem:[#allocation2] sm:$0xf] inf
    %18 = vst [vmem:[#allocation3] sm:$0xf] inf
  $region13: #{chamfer_loss.1} parent=0 // pred_fallthru
    _
  %v19 = vld [vmem:[%s0] sm:$0x1f]
  %v20 = vld [vmem:[%s0 + $0x8] sm:$0x1f]
  %v21 = vld [vmem:[%s0 + $0x10] sm:$0x1f]
  %v22 = vld [vmem:[%s0 + $0x18] sm:$0x1f]
  %v23 = vld [vmem:[%s1] sm:$0x1f]
  %v24 = vld [vmem:[%s1 + $0x8] sm:$0x1f]
  %v25 = vld [vmem:[%s1 + $0x10] sm:$0x1f]
  %v26 = vld [vmem:[%s1 + $0x18] sm:$0x1f]
  %27 = vxpose.xlu0.b32.start [1/16] %v19, 128
  %28 = vxpose.xlu0.b32.cont [2/16] 0.0, 128
  %29 = vxpose.xlu0.b32.cont [3/16] 0.0, 128
  %30 = vxpose.xlu0.b32.cont [4/16] 0.0, 128
  %31 = vxpose.xlu0.b32.cont [5/16] 0.0, 128
  %32 = vxpose.xlu0.b32.cont [6/16] 0.0, 128
  %33 = vxpose.xlu0.b32.cont [7/16] 0.0, 128
  %34 = vxpose.xlu0.b32.cont [8/16] 0.0, 128
  %35 = vxpose.xlu0.b32.cont [9/16] 0.0, 128
  %36 = vxpose.xlu0.b32.cont [10/16] 0.0, 128
  %37 = vxpose.xlu0.b32.cont [11/16] 0.0, 128
  %38 = vxpose.xlu0.b32.cont [12/16] 0.0, 128
  %39 = vxpose.xlu0.b32.cont [13/16] 0.0, 128
  %40 = vxpose.xlu0.b32.cont [14/16] 0.0, 128
  %41 = vxpose.xlu0.b32.cont [15/16] 0.0, 128
  %42 = vxpose.xlu0.b32.end [16/16] 0.0, 128
  %v43 = vpop.trf.xlu0
  %v44 = vpop.trf.xlu0
  %v45 = vpop.trf.xlu0
  %v46 = vpop.trf.xlu0
  %v47 = vpop.trf.xlu0
  %v48 = vpop.trf.xlu0
  %v49 = vpop.trf.xlu0
  %v50 = vpop.trf.xlu0
  %v51 = vpop.trf.xlu0
  %v52 = vpop.trf.xlu0
  %v53 = vpop.trf.xlu0
  %v54 = vpop.trf.xlu0
  %v55 = vpop.trf.xlu0
  %v56 = vpop.trf.xlu0
  %v57 = vpop.trf.xlu0
  %v58 = vpop.trf.xlu0
  %vm59 = vcmask 39936
  %v61 = vsel %vm59, %v43, 0
  %v64 = vsel %vm59, %v44, 0
  %v67 = vsel %vm59, %v45, 0
  %v70 = vsel %vm59, %v46, 0
  %v73 = vsel %vm59, %v47, 0
  %v76 = vsel %vm59, %v48, 0
  %v79 = vsel %vm59, %v49, 0
  %v82 = vsel %vm59, %v50, 0
  %v85 = vsel %vm59, %v51, 0
  %v88 = vsel %vm59, %v52, 0
  %v91 = vsel %vm59, %v53, 0
  %v94 = vsel %vm59, %v54, 0
  %v97 = vsel %vm59, %v55, 0
  %v100 = vsel %vm59, %v56, 0
  %v103 = vsel %vm59, %v57, 0
  %v106 = vsel %vm59, %v58, 0
  %vm108 = vcmask 1044480
  %v110 = vsel %vm108, %v23, 0
  %112 = vmatprep.subr.mxu0 0.0
  %113 = vmatpush1.msra.mxu0 %v110
  %114 = vmatprep.subr.mxu0 0.0
  %115 = vmatpush1.msra.mxu0 0.0
  %116 = vmatprep.subr.mxu0 0.0
  %117 = vmatpush1.msra.mxu0 0.0
  %118 = vmatprep.subr.mxu0 0.0
  %119 = vmatpush1.msra.mxu0 0.0
  %120 = vmatprep.subr.mxu0 0.0
  %121 = vmatpush1.msra.mxu0 0.0
  %122 = vmatprep.subr.mxu0 0.0
  %123 = vmatpush1.msra.mxu0 0.0
  %124 = vmatprep.subr.mxu0 0.0
  %125 = vmatpush1.msra.mxu0 0.0
  %126 = vmatprep.subr.mxu0 0.0
  %127 = vmatpush1.msra.mxu0 0.0
  %128 = vmatprep.subr.mxu0 0.0
  %129 = vmatpush1.msra.mxu0 0.0
  %130 = vmatprep.subr.mxu0 0.0
  %131 = vmatpush1.msra.mxu0 0.0
  %132 = vmatprep.subr.mxu0 0.0
  %133 = vmatpush1.msra.mxu0 0.0
  %134 = vmatprep.subr.mxu0 0.0
  %135 = vmatpush1.msra.mxu0 0.0
  %136 = vmatprep.subr.mxu0 0.0
  %137 = vmatpush1.msra.mxu0 0.0
  %138 = vmatprep.subr.mxu0 0.0
  %139 = vmatpush1.msra.mxu0 0.0
  %140 = vmatprep.subr.mxu0 0.0
  %141 = vmatpush1.msra.mxu0 0.0
  %142 = vmatprep.subr.mxu0 0.0
  %143 = vmatpush1.msra.mxu0 0.0
  %144 = vmatprep.subr.mxu0 0.0
  %145 = vmatpush1.msra.mxu0 0.0
  %146 = vmatprep.subr.mxu0 0.0
  %147 = vmatpush1.msra.mxu0 0.0
  %148 = vmatprep.subr.mxu0 0.0
  %149 = vmatpush1.msra.mxu0 0.0
  %150 = vmatprep.subr.mxu0 0.0
  %151 = vmatpush1.msra.mxu0 0.0
  %152 = vmatprep.subr.mxu0 0.0
  %153 = vmatpush1.msra.mxu0 0.0
  %154 = vmatprep.subr.mxu0 0.0
  %155 = vmatpush1.msra.mxu0 0.0
  %156 = vmatprep.subr.mxu0 0.0
  %157 = vmatpush1.msra.mxu0 0.0
  %158 = vmatprep.subr.mxu0 0.0
  %159 = vmatpush1.msra.mxu0 0.0
  %160 = vmatprep.subr.mxu0 0.0
  %161 = vmatpush1.msra.mxu0 0.0
  %162 = vmatprep.subr.mxu0 0.0
  %163 = vmatpush1.msra.mxu0 0.0
  %164 = vmatprep.subr.mxu0 0.0
  %165 = vmatpush1.msra.mxu0 0.0
  %166 = vmatprep.subr.mxu0 0.0
  %167 = vmatpush1.msra.mxu0 0.0
  %168 = vmatprep.subr.mxu0 0.0
  %169 = vmatpush1.msra.mxu0 0.0
  %170 = vmatprep.subr.mxu0 0.0
  %171 = vmatpush1.msra.mxu0 0.0
  %172 = vmatprep.subr.mxu0 0.0
  %173 = vmatpush1.msra.mxu0 0.0
  %174 = vmatprep.subr.mxu0 0.0
  %175 = vmatpush1.msra.mxu0 0.0
  %176 = vmatprep.mubr.f32.mxu0 0.0
  %177 = vmatmul.mubr.f32.gmra.mrb[0].mxu0 %v61
  %v178 = vpop.f32.mrb[0].mxu0
  %v179 = vadd.f32 0.0, %v178
  %v180 = vpop.f32.mrb[0].mxu0
  %181 = vmatprep.mubr.f32.mxu0 0.0
  %182 = vmatmul.mubr.f32.gmra.mrb[0].mxu0 %v64
  %v183 = vpop.f32.mrb[0].mxu0
  %v184 = vadd.f32 0.0, %v183
  %v185 = vpop.f32.mrb[0].mxu0
  %186 = vmatprep.mubr.f32.mxu0 0.0
  %187 = vmatmul.mubr.f32.gmra.mrb[0].mxu0 %v67
  %v188 = vpop.f32.mrb[0].mxu0
  %v189 = vadd.f32 0.0, %v188
  %v190 = vpop.f32.mrb[0].mxu0
  %191 = vmatprep.mubr.f32.mxu0 0.0
  %192 = vmatmul.mubr.f32.gmra.mrb[0].mxu0 %v70
  %v193 = vpop.f32.mrb[0].mxu0
  %v194 = vadd.f32 0.0, %v193
  %v195 = vpop.f32.mrb[0].mxu0
  %196 = vmatprep.mubr.f32.mxu0 0.0
  %197 = vmatmul.mubr.f32.gmra.mrb[0].mxu0 %v73
  %v198 = vpop.f32.mrb[0].mxu0
  %v199 = vadd.f32 0.0, %v198
  %v200 = vpop.f32.mrb[0].mxu0
  %201 = vmatprep.mubr.f32.mxu0 0.0
  %202 = vmatmul.mubr.f32.gmra.mrb[0].mxu0 %v76
  %v203 = vpop.f32.mrb[0].mxu0
  %v204 = vadd.f32 0.0, %v203
  %v205 = vpop.f32.mrb[0].mxu0
  %206 = vmatprep.mubr.f32.mxu0 0.0
  %207 = vmatmul.mubr.f32.gmra.mrb[0].mxu0 %v79
  %v208 = vpop.f32.mrb[0].mxu0
  %v209 = vadd.f32 0.0, %v208
  %v210 = vpop.f32.mrb[0].mxu0
  %211 = vmatprep.mubr.f32.mxu0 0.0
  %212 = vmatmul.mubr.f32.gmra.mrb[0].mxu0 %v82
  %v213 = vpop.f32.mrb[0].mxu0
  %v214 = vadd.f32 0.0, %v213
  %v215 = vpop.f32.mrb[0].mxu0
  %216 = vmatprep.mubr.f32.mxu0 0.0
  %217 = vmatmul.mubr.f32.gmra.mrb[0].mxu0 %v85
  %v218 = vpop.f32.mrb[0].mxu0
  %v219 = vadd.f32 0.0, %v218
  %v220 = vpop.f32.mrb[0].mxu0
  %221 = vmatprep.mubr.f32.mxu0 0.0
  %222 = vmatmul.mubr.f32.gmra.mrb[0].mxu0 %v88
  %v223 = vpop.f32.mrb[0].mxu0
  %v224 = vadd.f32 0.0, %v223
  %v225 = vpop.f32.mrb[0].mxu0
  %226 = vmatprep.mubr.f32.mxu0 0.0
  %227 = vmatmul.mubr.f32.gmra.mrb[0].mxu0 %v91
  %v228 = vpop.f32.mrb[0].mxu0
  %v229 = vadd.f32 0.0, %v228
  %v230 = vpop.f32.mrb[0].mxu0
  %231 = vmatprep.mubr.f32.mxu0 0.0
  %232 = vmatmul.mubr.f32.gmra.mrb[0].mxu0 %v94
  %v233 = vpop.f32.mrb[0].mxu0
  %v234 = vadd.f32 0.0, %v233
  %v235 = vpop.f32.mrb[0].mxu0
  %236 = vmatprep.mubr.f32.mxu0 0.0
  %237 = vmatmul.mubr.f32.gmra.mrb[0].mxu0 %v97
  %v238 = vpop.f32.mrb[0].mxu0
  %v239 = vadd.f32 0.0, %v238
  %v240 = vpop.f32.mrb[0].mxu0
  %241 = vmatprep.mubr.f32.mxu0 0.0
  %242 = vmatmul.mubr.f32.gmra.mrb[0].mxu0 %v100
  %v243 = vpop.f32.mrb[0].mxu0
  %v244 = vadd.f32 0.0, %v243
  %v245 = vpop.f32.mrb[0].mxu0
  %246 = vmatprep.mubr.f32.mxu0 0.0
  %247 = vmatmul.mubr.f32.gmra.mrb[0].mxu0 %v103
  %v248 = vpop.f32.mrb[0].mxu0
  %v249 = vadd.f32 0.0, %v248
  %v250 = vpop.f32.mrb[0].mxu0
  %251 = vmatprep.mubr.f32.mxu0 0.0
  %252 = vmatmul.mubr.f32.gmra.mrb[0].mxu0 %v106
  %v253 = vpop.f32.mrb[0].mxu0
  %v254 = vadd.f32 0.0, %v253
  %v255 = vpop.f32.mrb[0].mxu0
  %256 = vdwg.mxu0
  %257 = vxpose.xlu0.b32.start [1/16] %v20, 128
  %258 = vxpose.xlu0.b32.cont [2/16] 0.0, 128
  %259 = vxpose.xlu0.b32.cont [3/16] 0.0, 128
  %260 = vxpose.xlu0.b32.cont [4/16] 0.0, 128
  %261 = vxpose.xlu0.b32.cont [5/16] 0.0, 128
  %262 = vxpose.xlu0.b32.cont [6/16] 0.0, 128
  %263 = vxpose.xlu0.b32.cont [7/16] 0.0, 128
  %264 = vxpose.xlu0.b32.cont [8/16] 0.0, 128
  %265 = vxpose.xlu0.b32.cont [9/16] 0.0, 128
  %266 = vxpose.xlu0.b32.cont [10/16] 0.0, 128
  %267 = vxpose.xlu0.b32.cont [11/16] 0.0, 128
  %268 = vxpose.xlu0.b32.cont [12/16] 0.0, 128
  %269 = vxpose.xlu0.b32.cont [13/16] 0.0, 128
  %270 = vxpose.xlu0.b32.cont [14/16] 0.0, 128
  %271 = vxpose.xlu0.b32.cont [15/16] 0.0, 128
  %272 = vxpose.xlu0.b32.end [16/16] 0.0, 128
  %v273 = vpop.trf.xlu0
  %v274 = vpop.trf.xlu0
  %v275 = vpop.trf.xlu0
  %v276 = vpop.trf.xlu0
  %v277 = vpop.trf.xlu0
  %v278 = vpop.trf.xlu0
  %v279 = vpop.trf.xlu0
  %v280 = vpop.trf.xlu0
  %v281 = vpop.trf.xlu0
  %v282 = vpop.trf.xlu0
  %v283 = vpop.trf.xlu0
  %v284 = vpop.trf.xlu0
  %v285 = vpop.trf.xlu0
  %v286 = vpop.trf.xlu0
  %v287 = vpop.trf.xlu0
  %v288 = vpop.trf.xlu0
  %v290 = vsel %vm59, %v273, 0
  %v293 = vsel %vm59, %v274, 0
  %v296 = vsel %vm59, %v275, 0
  %v299 = vsel %vm59, %v276, 0
  %v302 = vsel %vm59, %v277, 0
  %v305 = vsel %vm59, %v278, 0
  %v308 = vsel %vm59, %v279, 0
  %v311 = vsel %vm59, %v280, 0
  %v314 = vsel %vm59, %v281, 0
  %v317 = vsel %vm59, %v282, 0
  %v320 = vsel %vm59, %v283, 0
  %v323 = vsel %vm59, %v284, 0
  %v326 = vsel %vm59, %v285, 0
  %v329 = vsel %vm59, %v286, 0
  %v332 = vsel %vm59, %v287, 0
  %v335 = vsel %vm59, %v288, 0
  %v338 = vsel %vm108, %v24, 0
  %340 = vmatprep.subr.mxu0 0.0
  %341 = vmatpush1.msra.mxu0 %v338
  %342 = vmatprep.subr.mxu0 0.0
  %343 = vmatpush1.msra.mxu0 0.0
  %344 = vmatprep.subr.mxu0 0.0
  %345 = vmatpush1.msra.mxu0 0.0
  %346 = vmatprep.subr.mxu0 0.0
  %347 = vmatpush1.msra.mxu0 0.0
  %348 = vmatprep.subr.mxu0 0.0
  %349 = vmatpush1.msra.mxu0 0.0
  %350 = vmatprep.subr.mxu0 0.0
  %351 = vmatpush1.msra.mxu0 0.0
  %352 = vmatprep.subr.mxu0 0.0
  %353 = vmatpush1.msra.mxu0 0.0
  %354 = vmatprep.subr.mxu0 0.0
  %355 = vmatpush1.msra.mxu0 0.0
  %356 = vmatprep.subr.mxu0 0.0
  %357 = vmatpush1.msra.mxu0 0.0
  %358 = vmatprep.subr.mxu0 0.0
  %359 = vmatpush1.msra.mxu0 0.0
  %360 = vmatprep.subr.mxu0 0.0
  %361 = vmatpush1.msra.mxu0 0.0
  %362 = vmatprep.subr.mxu0 0.0
  %363 = vmatpush1.msra.mxu0 0.0
  %364 = vmatprep.subr.mxu0 0.0
  %365 = vmatpush1.msra.mxu0 0.0
  %366 = vmatprep.subr.mxu0 0.0
  %367 = vmatpush1.msra.mxu0 0.0
  %368 = vmatprep.subr.mxu0 0.0
  %369 = vmatpush1.msra.mxu0 0.0
  %370 = vmatprep.subr.mxu0 0.0
  %371 = vmatpush1.msra.mxu0 0.0
  %372 = vmatprep.subr.mxu0 0.0
  %373 = vmatpush1.msra.mxu0 0.0
  %374 = vmatprep.subr.mxu0 0.0
  %375 = vmatpush1.msra.mxu0 0.0
  %376 = vmatprep.subr.mxu0 0.0
  %377 = vmatpush1.msra.mxu0 0.0
  %378 = vmatprep.subr.mxu0 0.0
  %379 = vmatpush1.msra.mxu0 0.0
  %380 = vmatprep.subr.mxu0 0.0
  %381 = vmatpush1.msra.mxu0 0.0
  %382 = vmatprep.subr.mxu0 0.0
  %383 = vmatpush1.msra.mxu0 0.0
  %384 = vmatprep.subr.mxu0 0.0
  %385 = vmatpush1.msra.mxu0 0.0
  %386 = vmatprep.subr.mxu0 0.0
  %387 = vmatpush1.msra.mxu0 0.0
  %388 = vmatprep.subr.mxu0 0.0
  %389 = vmatpush1.msra.mxu0 0.0
  %390 = vmatprep.subr.mxu0 0.0
  %391 = vmatpush1.msra.mxu0 0.0
  %392 = vmatprep.subr.mxu0 0.0
  %393 = vmatpush1.msra.mxu0 0.0
  %394 = vmatprep.subr.mxu0 0.0
  %395 = vmatpush1.msra.mxu0 0.0
  %396 = vmatprep.subr.mxu0 0.0
  %397 = vmatpush1.msra.mxu0 0.0
  %398 = vmatprep.subr.mxu0 0.0
  %399 = vmatpush1.msra.mxu0 0.0
  %400 = vmatprep.subr.mxu0 0.0
  %401 = vmatpush1.msra.mxu0 0.0
  %402 = vmatprep.subr.mxu0 0.0
  %403 = vmatpush1.msra.mxu0 0.0
  %404 = vmatprep.mubr.f32.mxu0 0.0
  %405 = vmatmul.mubr.f32.gmra.mrb[0].mxu0 %v290
  %v406 = vpop.f32.mrb[0].mxu0
  %v407 = vadd.f32 0.0, %v406
  %v408 = vpop.f32.mrb[0].mxu0
  %409 = vmatprep.mubr.f32.mxu0 0.0
  %410 = vmatmul.mubr.f32.gmra.mrb[0].mxu0 %v293
  %v411 = vpop.f32.mrb[0].mxu0
  %v412 = vadd.f32 0.0, %v411
  %v413 = vpop.f32.mrb[0].mxu0
  %414 = vmatprep.mubr.f32.mxu0 0.0
  %415 = vmatmul.mubr.f32.gmra.mrb[0].mxu0 %v296
  %v416 = vpop.f32.mrb[0].mxu0
  %v417 = vadd.f32 0.0, %v416
  %v418 = vpop.f32.mrb[0].mxu0
  %419 = vmatprep.mubr.f32.mxu0 0.0
  %420 = vmatmul.mubr.f32.gmra.mrb[0].mxu0 %v299
  %v421 = vpop.f32.mrb[0].mxu0
  %v422 = vadd.f32 0.0, %v421
  %v423 = vpop.f32.mrb[0].mxu0
  %424 = vmatprep.mubr.f32.mxu0 0.0
  %425 = vmatmul.mubr.f32.gmra.mrb[0].mxu0 %v302
  %v426 = vpop.f32.mrb[0].mxu0
  %v427 = vadd.f32 0.0, %v426
  %v428 = vpop.f32.mrb[0].mxu0
  %429 = vmatprep.mubr.f32.mxu0 0.0
  %430 = vmatmul.mubr.f32.gmra.mrb[0].mxu0 %v305
  %v431 = vpop.f32.mrb[0].mxu0
  %v432 = vadd.f32 0.0, %v431
  %v433 = vpop.f32.mrb[0].mxu0
  %434 = vmatprep.mubr.f32.mxu0 0.0
  %435 = vmatmul.mubr.f32.gmra.mrb[0].mxu0 %v308
  %v436 = vpop.f32.mrb[0].mxu0
  %v437 = vadd.f32 0.0, %v436
  %v438 = vpop.f32.mrb[0].mxu0
  %439 = vmatprep.mubr.f32.mxu0 0.0
  %440 = vmatmul.mubr.f32.gmra.mrb[0].mxu0 %v311
  %v441 = vpop.f32.mrb[0].mxu0
  %v442 = vadd.f32 0.0, %v441
  %v443 = vpop.f32.mrb[0].mxu0
  %444 = vmatprep.mubr.f32.mxu0 0.0
  %445 = vmatmul.mubr.f32.gmra.mrb[0].mxu0 %v314
  %v446 = vpop.f32.mrb[0].mxu0
  %v447 = vadd.f32 0.0, %v446
  %v448 = vpop.f32.mrb[0].mxu0
  %449 = vmatprep.mubr.f32.mxu0 0.0
  %450 = vmatmul.mubr.f32.gmra.mrb[0].mxu0 %v317
  %v451 = vpop.f32.mrb[0].mxu0
  %v452 = vadd.f32 0.0, %v451
  %v453 = vpop.f32.mrb[0].mxu0
  %454 = vmatprep.mubr.f32.mxu0 0.0
  %455 = vmatmul.mubr.f32.gmra.mrb[0].mxu0 %v320
  %v456 = vpop.f32.mrb[0].mxu0
  %v457 = vadd.f32 0.0, %v456
  %v458 = vpop.f32.mrb[0].mxu0
  %459 = vmatprep.mubr.f32.mxu0 0.0
  %460 = vmatmul.mubr.f32.gmra.mrb[0].mxu0 %v323
  %v461 = vpop.f32.mrb[0].mxu0
  %v462 = vadd.f32 0.0, %v461
  %v463 = vpop.f32.mrb[0].mxu0
  %464 = vmatprep.mubr.f32.mxu0 0.0
  %465 = vmatmul.mubr.f32.gmra.mrb[0].mxu0 %v326
  %v466 = vpop.f32.mrb[0].mxu0
  %v467 = vadd.f32 0.0, %v466
  %v468 = vpop.f32.mrb[0].mxu0
  %469 = vmatprep.mubr.f32.mxu0 0.0
  %470 = vmatmul.mubr.f32.gmra.mrb[0].mxu0 %v329
  %v471 = vpop.f32.mrb[0].mxu0
  %v472 = vadd.f32 0.0, %v471
  %v473 = vpop.f32.mrb[0].mxu0
  %474 = vmatprep.mubr.f32.mxu0 0.0
  %475 = vmatmul.mubr.f32.gmra.mrb[0].mxu0 %v332
  %v476 = vpop.f32.mrb[0].mxu0
  %v477 = vadd.f32 0.0, %v476
  %v478 = vpop.f32.mrb[0].mxu0
  %479 = vmatprep.mubr.f32.mxu0 0.0
  %480 = vmatmul.mubr.f32.gmra.mrb[0].mxu0 %v335
  %v481 = vpop.f32.mrb[0].mxu0
  %v482 = vadd.f32 0.0, %v481
  %v483 = vpop.f32.mrb[0].mxu0
  %484 = vdwg.mxu0
  %485 = vxpose.xlu0.b32.start [1/16] %v21, 128
  %486 = vxpose.xlu0.b32.cont [2/16] 0.0, 128
  %487 = vxpose.xlu0.b32.cont [3/16] 0.0, 128
  %488 = vxpose.xlu0.b32.cont [4/16] 0.0, 128
  %489 = vxpose.xlu0.b32.cont [5/16] 0.0, 128
  %490 = vxpose.xlu0.b32.cont [6/16] 0.0, 128
  %491 = vxpose.xlu0.b32.cont [7/16] 0.0, 128
  %492 = vxpose.xlu0.b32.cont [8/16] 0.0, 128
  %493 = vxpose.xlu0.b32.cont [9/16] 0.0, 128
  %494 = vxpose.xlu0.b32.cont [10/16] 0.0, 128
  %495 = vxpose.xlu0.b32.cont [11/16] 0.0, 128
  %496 = vxpose.xlu0.b32.cont [12/16] 0.0, 128
  %497 = vxpose.xlu0.b32.cont [13/16] 0.0, 128
  %498 = vxpose.xlu0.b32.cont [14/16] 0.0, 128
  %499 = vxpose.xlu0.b32.cont [15/16] 0.0, 128
  %500 = vxpose.xlu0.b32.end [16/16] 0.0, 128
  %v501 = vpop.trf.xlu0
  %v502 = vpop.trf.xlu0
  %v503 = vpop.trf.xlu0
  %v504 = vpop.trf.xlu0
  %v505 = vpop.trf.xlu0
  %v506 = vpop.trf.xlu0
  %v507 = vpop.trf.xlu0
  %v508 = vpop.trf.xlu0
  %v509 = vpop.trf.xlu0
  %v510 = vpop.trf.xlu0
  %v511 = vpop.trf.xlu0
  %v512 = vpop.trf.xlu0
  %v513 = vpop.trf.xlu0
  %v514 = vpop.trf.xlu0
  %v515 = vpop.trf.xlu0
  %v516 = vpop.trf.xlu0
  %v518 = vsel %vm59, %v501, 0
  %v521 = vsel %vm59, %v502, 0
  %v524 = vsel %vm59, %v503, 0
  %v527 = vsel %vm59, %v504, 0
  %v530 = vsel %vm59, %v505, 0
  %v533 = vsel %vm59, %v506, 0
  %v536 = vsel %vm59, %v507, 0
  %v539 = vsel %vm59, %v508, 0
  %v542 = vsel %vm59, %v509, 0
  %v545 = vsel %vm59, %v510, 0
  %v548 = vsel %vm59, %v511, 0
  %v551 = vsel %vm59, %v512, 0
  %v554 = vsel %vm59, %v513, 0
  %v557 = vsel %vm59, %v514, 0
  %v560 = vsel %vm59, %v515, 0
  %v563 = vsel %vm59, %v516, 0
  %v566 = vsel %vm108, %v25, 0
  %568 = vmatprep.subr.mxu0 0.0
  %569 = vmatpush1.msra.mxu0 %v566
  %570 = vmatprep.subr.mxu0 0.0
  %571 = vmatpush1.msra.mxu0 0.0
  %572 = vmatprep.subr.mxu0 0.0
  %573 = vmatpush1.msra.mxu0 0.0
  %574 = vmatprep.subr.mxu0 0.0
  %575 = vmatpush1.msra.mxu0 0.0
  %576 = vmatprep.subr.mxu0 0.0
  %577 = vmatpush1.msra.mxu0 0.0
  %578 = vmatprep.subr.mxu0 0.0
  %579 = vmatpush1.msra.mxu0 0.0
  %580 = vmatprep.subr.mxu0 0.0
  %581 = vmatpush1.msra.mxu0 0.0
  %582 = vmatprep.subr.mxu0 0.0
  %583 = vmatpush1.msra.mxu0 0.0
  %584 = vmatprep.subr.mxu0 0.0
  %585 = vmatpush1.msra.mxu0 0.0
  %586 = vmatprep.subr.mxu0 0.0
  %587 = vmatpush1.msra.mxu0 0.0
  %588 = vmatprep.subr.mxu0 0.0
  %589 = vmatpush1.msra.mxu0 0.0
  %590 = vmatprep.subr.mxu0 0.0
  %591 = vmatpush1.msra.mxu0 0.0
  %592 = vmatprep.subr.mxu0 0.0
  %593 = vmatpush1.msra.mxu0 0.0
  %594 = vmatprep.subr.mxu0 0.0
  %595 = vmatpush1.msra.mxu0 0.0
  %596 = vmatprep.subr.mxu0 0.0
  %597 = vmatpush1.msra.mxu0 0.0
  %598 = vmatprep.subr.mxu0 0.0
  %599 = vmatpush1.msra.mxu0 0.0
  %600 = vmatprep.subr.mxu0 0.0
  %601 = vmatpush1.msra.mxu0 0.0
  %602 = vmatprep.subr.mxu0 0.0
  %603 = vmatpush1.msra.mxu0 0.0
  %604 = vmatprep.subr.mxu0 0.0
  %605 = vmatpush1.msra.mxu0 0.0
  %606 = vmatprep.subr.mxu0 0.0
  %607 = vmatpush1.msra.mxu0 0.0
  %608 = vmatprep.subr.mxu0 0.0
  %609 = vmatpush1.msra.mxu0 0.0
  %610 = vmatprep.subr.mxu0 0.0
  %611 = vmatpush1.msra.mxu0 0.0
  %612 = vmatprep.subr.mxu0 0.0
  %613 = vmatpush1.msra.mxu0 0.0
  %614 = vmatprep.subr.mxu0 0.0
  %615 = vmatpush1.msra.mxu0 0.0
  %616 = vmatprep.subr.mxu0 0.0
  %617 = vmatpush1.msra.mxu0 0.0
  %618 = vmatprep.subr.mxu0 0.0
  %619 = vmatpush1.msra.mxu0 0.0
  %620 = vmatprep.subr.mxu0 0.0
  %621 = vmatpush1.msra.mxu0 0.0
  %622 = vmatprep.subr.mxu0 0.0
  %623 = vmatpush1.msra.mxu0 0.0
  %624 = vmatprep.subr.mxu0 0.0
  %625 = vmatpush1.msra.mxu0 0.0
  %626 = vmatprep.subr.mxu0 0.0
  %627 = vmatpush1.msra.mxu0 0.0
  %628 = vmatprep.subr.mxu0 0.0
  %629 = vmatpush1.msra.mxu0 0.0
  %630 = vmatprep.subr.mxu0 0.0
  %631 = vmatpush1.msra.mxu0 0.0
  %632 = vmatprep.mubr.f32.mxu0 0.0
  %633 = vmatmul.mubr.f32.gmra.mrb[0].mxu0 %v518
  %v634 = vpop.f32.mrb[0].mxu0
  %v635 = vadd.f32 0.0, %v634
  %v636 = vpop.f32.mrb[0].mxu0
  %637 = vmatprep.mubr.f32.mxu0 0.0
  %638 = vmatmul.mubr.f32.gmra.mrb[0].mxu0 %v521
  %v639 = vpop.f32.mrb[0].mxu0
  %v640 = vadd.f32 0.0, %v639
  %v641 = vpop.f32.mrb[0].mxu0
  %642 = vmatprep.mubr.f32.mxu0 0.0
  %643 = vmatmul.mubr.f32.gmra.mrb[0].mxu0 %v524
  %v644 = vpop.f32.mrb[0].mxu0
  %v645 = vadd.f32 0.0, %v644
  %v646 = vpop.f32.mrb[0].mxu0
  %647 = vmatprep.mubr.f32.mxu0 0.0
  %648 = vmatmul.mubr.f32.gmra.mrb[0].mxu0 %v527
  %v649 = vpop.f32.mrb[0].mxu0
  %v650 = vadd.f32 0.0, %v649
  %v651 = vpop.f32.mrb[0].mxu0
  %652 = vmatprep.mubr.f32.mxu0 0.0
  %653 = vmatmul.mubr.f32.gmra.mrb[0].mxu0 %v530
  %v654 = vpop.f32.mrb[0].mxu0
  %v655 = vadd.f32 0.0, %v654
  %v656 = vpop.f32.mrb[0].mxu0
  %657 = vmatprep.mubr.f32.mxu0 0.0
  %658 = vmatmul.mubr.f32.gmra.mrb[0].mxu0 %v533
  %v659 = vpop.f32.mrb[0].mxu0
  %v660 = vadd.f32 0.0, %v659
  %v661 = vpop.f32.mrb[0].mxu0
  %662 = vmatprep.mubr.f32.mxu0 0.0
  %663 = vmatmul.mubr.f32.gmra.mrb[0].mxu0 %v536
  %v664 = vpop.f32.mrb[0].mxu0
  %v665 = vadd.f32 0.0, %v664
  %v666 = vpop.f32.mrb[0].mxu0
  %667 = vmatprep.mubr.f32.mxu0 0.0
  %668 = vmatmul.mubr.f32.gmra.mrb[0].mxu0 %v539
  %v669 = vpop.f32.mrb[0].mxu0
  %v670 = vadd.f32 0.0, %v669
  %v671 = vpop.f32.mrb[0].mxu0
  %672 = vmatprep.mubr.f32.mxu0 0.0
  %673 = vmatmul.mubr.f32.gmra.mrb[0].mxu0 %v542
  %v674 = vpop.f32.mrb[0].mxu0
  %v675 = vadd.f32 0.0, %v674
  %v676 = vpop.f32.mrb[0].mxu0
  %677 = vmatprep.mubr.f32.mxu0 0.0
  %678 = vmatmul.mubr.f32.gmra.mrb[0].mxu0 %v545
  %v679 = vpop.f32.mrb[0].mxu0
  %v680 = vadd.f32 0.0, %v679
  %v681 = vpop.f32.mrb[0].mxu0
  %682 = vmatprep.mubr.f32.mxu0 0.0
  %683 = vmatmul.mubr.f32.gmra.mrb[0].mxu0 %v548
  %v684 = vpop.f32.mrb[0].mxu0
  %v685 = vadd.f32 0.0, %v684
  %v686 = vpop.f32.mrb[0].mxu0
  %687 = vmatprep.mubr.f32.mxu0 0.0
  %688 = vmatmul.mubr.f32.gmra.mrb[0].mxu0 %v551
  %v689 = vpop.f32.mrb[0].mxu0
  %v690 = vadd.f32 0.0, %v689
  %v691 = vpop.f32.mrb[0].mxu0
  %692 = vmatprep.mubr.f32.mxu0 0.0
  %693 = vmatmul.mubr.f32.gmra.mrb[0].mxu0 %v554
  %v694 = vpop.f32.mrb[0].mxu0
  %v695 = vadd.f32 0.0, %v694
  %v696 = vpop.f32.mrb[0].mxu0
  %697 = vmatprep.mubr.f32.mxu0 0.0
  %698 = vmatmul.mubr.f32.gmra.mrb[0].mxu0 %v557
  %v699 = vpop.f32.mrb[0].mxu0
  %v700 = vadd.f32 0.0, %v699
  %v701 = vpop.f32.mrb[0].mxu0
  %702 = vmatprep.mubr.f32.mxu0 0.0
  %703 = vmatmul.mubr.f32.gmra.mrb[0].mxu0 %v560
  %v704 = vpop.f32.mrb[0].mxu0
  %v705 = vadd.f32 0.0, %v704
  %v706 = vpop.f32.mrb[0].mxu0
  %707 = vmatprep.mubr.f32.mxu0 0.0
  %708 = vmatmul.mubr.f32.gmra.mrb[0].mxu0 %v563
  %v709 = vpop.f32.mrb[0].mxu0
  %v710 = vadd.f32 0.0, %v709
  %v711 = vpop.f32.mrb[0].mxu0
  %712 = vdwg.mxu0
  %713 = vxpose.xlu0.b32.start [1/16] %v22, 128
  %714 = vxpose.xlu0.b32.cont [2/16] 0.0, 128
  %715 = vxpose.xlu0.b32.cont [3/16] 0.0, 128
  %716 = vxpose.xlu0.b32.cont [4/16] 0.0, 128
  %717 = vxpose.xlu0.b32.cont [5/16] 0.0, 128
  %718 = vxpose.xlu0.b32.cont [6/16] 0.0, 128
  %719 = vxpose.xlu0.b32.cont [7/16] 0.0, 128
  %720 = vxpose.xlu0.b32.cont [8/16] 0.0, 128
  %721 = vxpose.xlu0.b32.cont [9/16] 0.0, 128
  %722 = vxpose.xlu0.b32.cont [10/16] 0.0, 128
  %723 = vxpose.xlu0.b32.cont [11/16] 0.0, 128
  %724 = vxpose.xlu0.b32.cont [12/16] 0.0, 128
  %725 = vxpose.xlu0.b32.cont [13/16] 0.0, 128
  %726 = vxpose.xlu0.b32.cont [14/16] 0.0, 128
  %727 = vxpose.xlu0.b32.cont [15/16] 0.0, 128
  %728 = vxpose.xlu0.b32.end [16/16] 0.0, 128
  %v729 = vpop.trf.xlu0
  %v730 = vpop.trf.xlu0
  %v731 = vpop.trf.xlu0
  %v732 = vpop.trf.xlu0
  %v733 = vpop.trf.xlu0
  %v734 = vpop.trf.xlu0
  %v735 = vpop.trf.xlu0
  %v736 = vpop.trf.xlu0
  %v737 = vpop.trf.xlu0
  %v738 = vpop.trf.xlu0
  %v739 = vpop.trf.xlu0
  %v740 = vpop.trf.xlu0
  %v741 = vpop.trf.xlu0
  %v742 = vpop.trf.xlu0
  %v743 = vpop.trf.xlu0
  %v744 = vpop.trf.xlu0
  %v746 = vsel %vm59, %v729, 0
  %v749 = vsel %vm59, %v730, 0
  %v752 = vsel %vm59, %v731, 0
  %v755 = vsel %vm59, %v732, 0
  %v758 = vsel %vm59, %v733, 0
  %v761 = vsel %vm59, %v734, 0
  %v764 = vsel %vm59, %v735, 0
  %v767 = vsel %vm59, %v736, 0
  %v770 = vsel %vm59, %v737, 0
  %v773 = vsel %vm59, %v738, 0
  %v776 = vsel %vm59, %v739, 0
  %v779 = vsel %vm59, %v740, 0
  %v782 = vsel %vm59, %v741, 0
  %v785 = vsel %vm59, %v742, 0
  %v788 = vsel %vm59, %v743, 0
  %v791 = vsel %vm59, %v744, 0
  %v794 = vsel %vm108, %v26, 0
  %796 = vmatprep.subr.mxu0 0.0
  %797 = vmatpush1.msra.mxu0 %v794
  %798 = vmatprep.subr.mxu0 0.0
  %799 = vmatpush1.msra.mxu0 0.0
  %800 = vmatprep.subr.mxu0 0.0
  %801 = vmatpush1.msra.mxu0 0.0
  %802 = vmatprep.subr.mxu0 0.0
  %803 = vmatpush1.msra.mxu0 0.0
  %804 = vmatprep.subr.mxu0 0.0
  %805 = vmatpush1.msra.mxu0 0.0
  %806 = vmatprep.subr.mxu0 0.0
  %807 = vmatpush1.msra.mxu0 0.0
  %808 = vmatprep.subr.mxu0 0.0
  %809 = vmatpush1.msra.mxu0 0.0
  %810 = vmatprep.subr.mxu0 0.0
  %811 = vmatpush1.msra.mxu0 0.0
  %812 = vmatprep.subr.mxu0 0.0
  %813 = vmatpush1.msra.mxu0 0.0
  %814 = vmatprep.subr.mxu0 0.0
  %815 = vmatpush1.msra.mxu0 0.0
  %816 = vmatprep.subr.mxu0 0.0
  %817 = vmatpush1.msra.mxu0 0.0
  %818 = vmatprep.subr.mxu0 0.0
  %819 = vmatpush1.msra.mxu0 0.0
  %820 = vmatprep.subr.mxu0 0.0
  %821 = vmatpush1.msra.mxu0 0.0
  %822 = vmatprep.subr.mxu0 0.0
  %823 = vmatpush1.msra.mxu0 0.0
  %824 = vmatprep.subr.mxu0 0.0
  %825 = vmatpush1.msra.mxu0 0.0
  %826 = vmatprep.subr.mxu0 0.0
  %827 = vmatpush1.msra.mxu0 0.0
  %828 = vmatprep.subr.mxu0 0.0
  %829 = vmatpush1.msra.mxu0 0.0
  %830 = vmatprep.subr.mxu0 0.0
  %831 = vmatpush1.msra.mxu0 0.0
  %832 = vmatprep.subr.mxu0 0.0
  %833 = vmatpush1.msra.mxu0 0.0
  %834 = vmatprep.subr.mxu0 0.0
  %835 = vmatpush1.msra.mxu0 0.0
  %836 = vmatprep.subr.mxu0 0.0
  %837 = vmatpush1.msra.mxu0 0.0
  %838 = vmatprep.subr.mxu0 0.0
  %839 = vmatpush1.msra.mxu0 0.0
  %840 = vmatprep.subr.mxu0 0.0
  %841 = vmatpush1.msra.mxu0 0.0
  %842 = vmatprep.subr.mxu0 0.0
  %843 = vmatpush1.msra.mxu0 0.0
  %844 = vmatprep.subr.mxu0 0.0
  %845 = vmatpush1.msra.mxu0 0.0
  %846 = vmatprep.subr.mxu0 0.0
  %847 = vmatpush1.msra.mxu0 0.0
  %848 = vmatprep.subr.mxu0 0.0
  %849 = vmatpush1.msra.mxu0 0.0
  %850 = vmatprep.subr.mxu0 0.0
  %851 = vmatpush1.msra.mxu0 0.0
  %852 = vmatprep.subr.mxu0 0.0
  %853 = vmatpush1.msra.mxu0 0.0
  %854 = vmatprep.subr.mxu0 0.0
  %855 = vmatpush1.msra.mxu0 0.0
  %856 = vmatprep.subr.mxu0 0.0
  %857 = vmatpush1.msra.mxu0 0.0
  %858 = vmatprep.subr.mxu0 0.0
  %859 = vmatpush1.msra.mxu0 0.0
  %860 = vmatprep.mubr.f32.mxu0 0.0
  %861 = vmatmul.mubr.f32.gmra.mrb[0].mxu0 %v746
  %v862 = vpop.f32.mrb[0].mxu0
  %v863 = vadd.f32 0.0, %v862
  %v864 = vpop.f32.mrb[0].mxu0
  %865 = vmatprep.mubr.f32.mxu0 0.0
  %866 = vmatmul.mubr.f32.gmra.mrb[0].mxu0 %v749
  %v867 = vpop.f32.mrb[0].mxu0
  %v868 = vadd.f32 0.0, %v867
  %v869 = vpop.f32.mrb[0].mxu0
  %870 = vmatprep.mubr.f32.mxu0 0.0
  %871 = vmatmul.mubr.f32.gmra.mrb[0].mxu0 %v752
  %v872 = vpop.f32.mrb[0].mxu0
  %v873 = vadd.f32 0.0, %v872
  %v874 = vpop.f32.mrb[0].mxu0
  %875 = vmatprep.mubr.f32.mxu0 0.0
  %876 = vmatmul.mubr.f32.gmra.mrb[0].mxu0 %v755
  %v877 = vpop.f32.mrb[0].mxu0
  %v878 = vadd.f32 0.0, %v877
  %v879 = vpop.f32.mrb[0].mxu0
  %880 = vmatprep.mubr.f32.mxu0 0.0
  %881 = vmatmul.mubr.f32.gmra.mrb[0].mxu0 %v758
  %v882 = vpop.f32.mrb[0].mxu0
  %v883 = vadd.f32 0.0, %v882
  %v884 = vpop.f32.mrb[0].mxu0
  %885 = vmatprep.mubr.f32.mxu0 0.0
  %886 = vmatmul.mubr.f32.gmra.mrb[0].mxu0 %v761
  %v887 = vpop.f32.mrb[0].mxu0
  %v888 = vadd.f32 0.0, %v887
  %v889 = vpop.f32.mrb[0].mxu0
  %890 = vmatprep.mubr.f32.mxu0 0.0
  %891 = vmatmul.mubr.f32.gmra.mrb[0].mxu0 %v764
  %v892 = vpop.f32.mrb[0].mxu0
  %v893 = vadd.f32 0.0, %v892
  %v894 = vpop.f32.mrb[0].mxu0
  %895 = vmatprep.mubr.f32.mxu0 0.0
  %896 = vmatmul.mubr.f32.gmra.mrb[0].mxu0 %v767
  %v897 = vpop.f32.mrb[0].mxu0
  %v898 = vadd.f32 0.0, %v897
  %v899 = vpop.f32.mrb[0].mxu0
  %900 = vmatprep.mubr.f32.mxu0 0.0
  %901 = vmatmul.mubr.f32.gmra.mrb[0].mxu0 %v770
  %v902 = vpop.f32.mrb[0].mxu0
  %v903 = vadd.f32 0.0, %v902
  %v904 = vpop.f32.mrb[0].mxu0
  %905 = vmatprep.mubr.f32.mxu0 0.0
  %906 = vmatmul.mubr.f32.gmra.mrb[0].mxu0 %v773
  %v907 = vpop.f32.mrb[0].mxu0
  %v908 = vadd.f32 0.0, %v907
  %v909 = vpop.f32.mrb[0].mxu0
  %910 = vmatprep.mubr.f32.mxu0 0.0
  %911 = vmatmul.mubr.f32.gmra.mrb[0].mxu0 %v776
  %v912 = vpop.f32.mrb[0].mxu0
  %v913 = vadd.f32 0.0, %v912
  %v914 = vpop.f32.mrb[0].mxu0
  %915 = vmatprep.mubr.f32.mxu0 0.0
  %916 = vmatmul.mubr.f32.gmra.mrb[0].mxu0 %v779
  %v917 = vpop.f32.mrb[0].mxu0
  %v918 = vadd.f32 0.0, %v917
  %v919 = vpop.f32.mrb[0].mxu0
  %920 = vmatprep.mubr.f32.mxu0 0.0
  %921 = vmatmul.mubr.f32.gmra.mrb[0].mxu0 %v782
  %v922 = vpop.f32.mrb[0].mxu0
  %v923 = vadd.f32 0.0, %v922
  %v924 = vpop.f32.mrb[0].mxu0
  %925 = vmatprep.mubr.f32.mxu0 0.0
  %926 = vmatmul.mubr.f32.gmra.mrb[0].mxu0 %v785
  %v927 = vpop.f32.mrb[0].mxu0
  %v928 = vadd.f32 0.0, %v927
  %v929 = vpop.f32.mrb[0].mxu0
  %930 = vmatprep.mubr.f32.mxu0 0.0
  %931 = vmatmul.mubr.f32.gmra.mrb[0].mxu0 %v788
  %v932 = vpop.f32.mrb[0].mxu0
  %v933 = vadd.f32 0.0, %v932
  %v934 = vpop.f32.mrb[0].mxu0
  %935 = vmatprep.mubr.f32.mxu0 0.0
  %936 = vmatmul.mubr.f32.gmra.mrb[0].mxu0 %v791
  %v937 = vpop.f32.mrb[0].mxu0
  %v938 = vadd.f32 0.0, %v937
  %v939 = vpop.f32.mrb[0].mxu0
  %940 = vdwg.mxu0
  %s941 = smul.u32 0, 128
  %s942 = smul.u32 0, 128
  %s943 = sshra.s32 %s941, 7
  %s944 = sand.u32 %s941, 127
  %s945 = scalar_lea.vmem [#allocation3], %s943
  %v946 = vld [vmem:[%s945] sm:$0xf]
  %947 = vmin.xlane.f32.xlu0 %v179
  %v948 = vpop.xlane.xlu0 %947
  %949 = vmin.xlane.f32.xlu0 %v184
  %v950 = vpop.xlane.xlu0 %949
  %951 = vmin.xlane.f32.xlu0 %v189
  %v952 = vpop.xlane.xlu0 %951
  %953 = vmin.xlane.f32.xlu0 %v194
  %v954 = vpop.xlane.xlu0 %953
  %955 = vmin.xlane.f32.xlu0 %v199
  %v956 = vpop.xlane.xlu0 %955
  %957 = vmin.xlane.f32.xlu0 %v204
  %v958 = vpop.xlane.xlu0 %957
  %959 = vmin.xlane.f32.xlu0 %v209
  %v960 = vpop.xlane.xlu0 %959
  %961 = vmin.xlane.f32.xlu0 %v214
  %v962 = vpop.xlane.xlu0 %961
  %963 = vmin.xlane.f32.xlu0 %v219
  %v964 = vpop.xlane.xlu0 %963
  %965 = vmin.xlane.f32.xlu0 %v224
  %v966 = vpop.xlane.xlu0 %965
  %967 = vmin.xlane.f32.xlu0 %v229
  %v968 = vpop.xlane.xlu0 %967
  %969 = vmin.xlane.f32.xlu0 %v234
  %v970 = vpop.xlane.xlu0 %969
  %971 = vmin.xlane.f32.xlu0 %v239
  %v972 = vpop.xlane.xlu0 %971
  %973 = vmin.xlane.f32.xlu0 %v244
  %v974 = vpop.xlane.xlu0 %973
  %975 = vmin.xlane.f32.xlu0 %v249
  %v976 = vpop.xlane.xlu0 %975
  %977 = vmin.xlane.f32.xlu0 %v254
  %v978 = vpop.xlane.xlu0 %977
  %979 = vmin.xlane.f32.xlu0 %v407
  %v980 = vpop.xlane.xlu0 %979
  %981 = vmin.xlane.f32.xlu0 %v412
  %v982 = vpop.xlane.xlu0 %981
  %983 = vmin.xlane.f32.xlu0 %v417
  %v984 = vpop.xlane.xlu0 %983
  %985 = vmin.xlane.f32.xlu0 %v422
  %v986 = vpop.xlane.xlu0 %985
  %987 = vmin.xlane.f32.xlu0 %v427
  %v988 = vpop.xlane.xlu0 %987
  %989 = vmin.xlane.f32.xlu0 %v432
  %v990 = vpop.xlane.xlu0 %989
  %991 = vmin.xlane.f32.xlu0 %v437
  %v992 = vpop.xlane.xlu0 %991
  %993 = vmin.xlane.f32.xlu0 %v442
  %v994 = vpop.xlane.xlu0 %993
  %995 = vmin.xlane.f32.xlu0 %v447
  %v996 = vpop.xlane.xlu0 %995
  %997 = vmin.xlane.f32.xlu0 %v452
  %v998 = vpop.xlane.xlu0 %997
  %999 = vmin.xlane.f32.xlu0 %v457
  %v1000 = vpop.xlane.xlu0 %999
  %1001 = vmin.xlane.f32.xlu0 %v462
  %v1002 = vpop.xlane.xlu0 %1001
  %1003 = vmin.xlane.f32.xlu0 %v467
  %v1004 = vpop.xlane.xlu0 %1003
  %1005 = vmin.xlane.f32.xlu0 %v472
  %v1006 = vpop.xlane.xlu0 %1005
  %1007 = vmin.xlane.f32.xlu0 %v477
  %v1008 = vpop.xlane.xlu0 %1007
  %1009 = vmin.xlane.f32.xlu0 %v482
  %v1010 = vpop.xlane.xlu0 %1009
  %1011 = vmin.xlane.f32.xlu0 %v635
  %v1012 = vpop.xlane.xlu0 %1011
  %1013 = vmin.xlane.f32.xlu0 %v640
  %v1014 = vpop.xlane.xlu0 %1013
  %1015 = vmin.xlane.f32.xlu0 %v645
  %v1016 = vpop.xlane.xlu0 %1015
  %1017 = vmin.xlane.f32.xlu0 %v650
  %v1018 = vpop.xlane.xlu0 %1017
  %1019 = vmin.xlane.f32.xlu0 %v655
  %v1020 = vpop.xlane.xlu0 %1019
  %1021 = vmin.xlane.f32.xlu0 %v660
  %v1022 = vpop.xlane.xlu0 %1021
  %1023 = vmin.xlane.f32.xlu0 %v665
  %v1024 = vpop.xlane.xlu0 %1023
  %1025 = vmin.xlane.f32.xlu0 %v670
  %v1026 = vpop.xlane.xlu0 %1025
  %1027 = vmin.xlane.f32.xlu0 %v675
  %v1028 = vpop.xlane.xlu0 %1027
  %1029 = vmin.xlane.f32.xlu0 %v680
  %v1030 = vpop.xlane.xlu0 %1029
  %1031 = vmin.xlane.f32.xlu0 %v685
  %v1032 = vpop.xlane.xlu0 %1031
  %1033 = vmin.xlane.f32.xlu0 %v690
  %v1034 = vpop.xlane.xlu0 %1033
  %1035 = vmin.xlane.f32.xlu0 %v695
  %v1036 = vpop.xlane.xlu0 %1035
  %1037 = vmin.xlane.f32.xlu0 %v700
  %v1038 = vpop.xlane.xlu0 %1037
  %1039 = vmin.xlane.f32.xlu0 %v705
  %v1040 = vpop.xlane.xlu0 %1039
  %1041 = vmin.xlane.f32.xlu0 %v710
  %v1042 = vpop.xlane.xlu0 %1041
  %1043 = vmin.xlane.f32.xlu0 %v863
  %v1044 = vpop.xlane.xlu0 %1043
  %1045 = vmin.xlane.f32.xlu0 %v868
  %v1046 = vpop.xlane.xlu0 %1045
  %1047 = vmin.xlane.f32.xlu0 %v873
  %v1048 = vpop.xlane.xlu0 %1047
  %1049 = vmin.xlane.f32.xlu0 %v878
  %v1050 = vpop.xlane.xlu0 %1049
  %1051 = vmin.xlane.f32.xlu0 %v883
  %v1052 = vpop.xlane.xlu0 %1051
  %1053 = vmin.xlane.f32.xlu0 %v888
  %v1054 = vpop.xlane.xlu0 %1053
  %1055 = vmin.xlane.f32.xlu0 %v893
  %v1056 = vpop.xlane.xlu0 %1055
  %1057 = vmin.xlane.f32.xlu0 %v898
  %v1058 = vpop.xlane.xlu0 %1057
  %1059 = vmin.xlane.f32.xlu0 %v903
  %v1060 = vpop.xlane.xlu0 %1059
  %1061 = vmin.xlane.f32.xlu0 %v908
  %v1062 = vpop.xlane.xlu0 %1061
  %1063 = vmin.xlane.f32.xlu0 %v913
  %v1064 = vpop.xlane.xlu0 %1063
  %1065 = vmin.xlane.f32.xlu0 %v918
  %v1066 = vpop.xlane.xlu0 %1065
  %1067 = vmin.xlane.f32.xlu0 %v923
  %v1068 = vpop.xlane.xlu0 %1067
  %1069 = vmin.xlane.f32.xlu0 %v928
  %v1070 = vpop.xlane.xlu0 %1069
  %1071 = vmin.xlane.f32.xlu0 %v933
  %v1072 = vpop.xlane.xlu0 %1071
  %1073 = vmin.xlane.f32.xlu0 %v938
  %v1074 = vpop.xlane.xlu0 %1073
  %v1139 = vlaneseq
  %v1140 = vand.u32 %v1139, 127
  %v1141 = vlaneseq
  %v1142 = vshrl.u32 %v1141, 7
  %v1143 = vsub.s32 %v1140, %v1142
  %v1144 = vrot.slane %v948, %v1143
  %v1145 = vadd.s32 %v1140, 4294967288
  %v1146 = vlaneseq
  %v1147 = vshrl.u32 %v1146, 7
  %v1148 = vsub.s32 %v1145, %v1147
  %v1149 = vrot.slane %v950, %v1148
  %vm1150 = vcmask 130112
  %v1151 = vsel %vm1150, %v1149, %v1144
  %v1152 = vadd.s32 %v1140, 4294967280
  %v1153 = vlaneseq
  %v1154 = vshrl.u32 %v1153, 7
  %v1155 = vsub.s32 %v1152, %v1154
  %v1156 = vrot.slane %v952, %v1155
  %vm1157 = vcmask 195712
  %v1158 = vsel %vm1157, %v1156, %v1151
  %v1159 = vadd.s32 %v1140, 4294967272
  %v1160 = vlaneseq
  %v1161 = vshrl.u32 %v1160, 7
  %v1162 = vsub.s32 %v1159, %v1161
  %v1163 = vrot.slane %v954, %v1162
  %vm1164 = vcmask 261312
  %v1165 = vsel %vm1164, %v1163, %v1158
  %v1166 = vadd.s32 %v1140, 4294967264
  %v1167 = vlaneseq
  %v1168 = vshrl.u32 %v1167, 7
  %v1169 = vsub.s32 %v1166, %v1168
  %v1170 = vrot.slane %v956, %v1169
  %vm1171 = vcmask 326912
  %v1172 = vsel %vm1171, %v1170, %v1165
  %v1173 = vadd.s32 %v1140, 4294967256
  %v1174 = vlaneseq
  %v1175 = vshrl.u32 %v1174, 7
  %v1176 = vsub.s32 %v1173, %v1175
  %v1177 = vrot.slane %v958, %v1176
  %vm1178 = vcmask 392512
  %v1179 = vsel %vm1178, %v1177, %v1172
  %v1180 = vadd.s32 %v1140, 4294967248
  %v1181 = vlaneseq
  %v1182 = vshrl.u32 %v1181, 7
  %v1183 = vsub.s32 %v1180, %v1182
  %v1184 = vrot.slane %v960, %v1183
  %vm1185 = vcmask 458112
  %v1186 = vsel %vm1185, %v1184, %v1179
  %v1187 = vadd.s32 %v1140, 4294967240
  %v1188 = vlaneseq
  %v1189 = vshrl.u32 %v1188, 7
  %v1190 = vsub.s32 %v1187, %v1189
  %v1191 = vrot.slane %v962, %v1190
  %vm1192 = vcmask 523712
  %v1193 = vsel %vm1192, %v1191, %v1186
  %v1194 = vadd.s32 %v1140, 4294967232
  %v1195 = vlaneseq
  %v1196 = vshrl.u32 %v1195, 7
  %v1197 = vsub.s32 %v1194, %v1196
  %v1198 = vrot.slane %v964, %v1197
  %vm1199 = vcmask 589312
  %v1200 = vsel %vm1199, %v1198, %v1193
  %v1201 = vadd.s32 %v1140, 4294967224
  %v1202 = vlaneseq
  %v1203 = vshrl.u32 %v1202, 7
  %v1204 = vsub.s32 %v1201, %v1203
  %v1205 = vrot.slane %v966, %v1204
  %vm1206 = vcmask 654912
  %v1207 = vsel %vm1206, %v1205, %v1200
  %v1208 = vadd.s32 %v1140, 4294967216
  %v1209 = vlaneseq
  %v1210 = vshrl.u32 %v1209, 7
  %v1211 = vsub.s32 %v1208, %v1210
  %v1212 = vrot.slane %v968, %v1211
  %vm1213 = vcmask 720512
  %v1214 = vsel %vm1213, %v1212, %v1207
  %v1215 = vadd.s32 %v1140, 4294967208
  %v1216 = vlaneseq
  %v1217 = vshrl.u32 %v1216, 7
  %v1218 = vsub.s32 %v1215, %v1217
  %v1219 = vrot.slane %v970, %v1218
  %vm1220 = vcmask 786112
  %v1221 = vsel %vm1220, %v1219, %v1214
  %v1222 = vadd.s32 %v1140, 4294967200
  %v1223 = vlaneseq
  %v1224 = vshrl.u32 %v1223, 7
  %v1225 = vsub.s32 %v1222, %v1224
  %v1226 = vrot.slane %v972, %v1225
  %vm1227 = vcmask 851712
  %v1228 = vsel %vm1227, %v1226, %v1221
  %v1229 = vadd.s32 %v1140, 4294967192
  %v1230 = vlaneseq
  %v1231 = vshrl.u32 %v1230, 7
  %v1232 = vsub.s32 %v1229, %v1231
  %v1233 = vrot.slane %v974, %v1232
  %vm1234 = vcmask 917312
  %v1235 = vsel %vm1234, %v1233, %v1228
  %v1236 = vadd.s32 %v1140, 4294967184
  %v1237 = vlaneseq
  %v1238 = vshrl.u32 %v1237, 7
  %v1239 = vsub.s32 %v1236, %v1238
  %v1240 = vrot.slane %v976, %v1239
  %vm1241 = vcmask 982912
  %v1242 = vsel %vm1241, %v1240, %v1235
  %v1243 = vadd.s32 %v1140, 4294967176
  %v1244 = vlaneseq
  %v1245 = vshrl.u32 %v1244, 7
  %v1246 = vsub.s32 %v1243, %v1245
  %v1247 = vrot.slane %v978, %v1246
  %vm1248 = vcmask 1048512
  %v1249 = vsel %vm1248, %v1247, %v1242
  %v1250 = vlaneseq
  %v1251 = vshrl.u32 %v1250, 7
  %v1252 = vsub.s32 %v1140, %v1251
  %v1253 = vrot.slane %v980, %v1252
  %v1254 = vlaneseq
  %v1255 = vshrl.u32 %v1254, 7
  %v1256 = vsub.s32 %v1145, %v1255
  %v1257 = vrot.slane %v982, %v1256
  %v1258 = vsel %vm1150, %v1257, %v1253
  %v1259 = vlaneseq
  %v1260 = vshrl.u32 %v1259, 7
  %v1261 = vsub.s32 %v1152, %v1260
  %v1262 = vrot.slane %v984, %v1261
  %v1263 = vsel %vm1157, %v1262, %v1258
  %v1264 = vlaneseq
  %v1265 = vshrl.u32 %v1264, 7
  %v1266 = vsub.s32 %v1159, %v1265
  %v1267 = vrot.slane %v986, %v1266
  %v1268 = vsel %vm1164, %v1267, %v1263
  %v1269 = vlaneseq
  %v1270 = vshrl.u32 %v1269, 7
  %v1271 = vsub.s32 %v1166, %v1270
  %v1272 = vrot.slane %v988, %v1271
  %v1273 = vsel %vm1171, %v1272, %v1268
  %v1274 = vlaneseq
  %v1275 = vshrl.u32 %v1274, 7
  %v1276 = vsub.s32 %v1173, %v1275
  %v1277 = vrot.slane %v990, %v1276
  %v1278 = vsel %vm1178, %v1277, %v1273
  %v1279 = vlaneseq
  %v1280 = vshrl.u32 %v1279, 7
  %v1281 = vsub.s32 %v1180, %v1280
  %v1282 = vrot.slane %v992, %v1281
  %v1283 = vsel %vm1185, %v1282, %v1278
  %v1284 = vlaneseq
  %v1285 = vshrl.u32 %v1284, 7
  %v1286 = vsub.s32 %v1187, %v1285
  %v1287 = vrot.slane %v994, %v1286
  %v1288 = vsel %vm1192, %v1287, %v1283
  %v1289 = vlaneseq
  %v1290 = vshrl.u32 %v1289, 7
  %v1291 = vsub.s32 %v1194, %v1290
  %v1292 = vrot.slane %v996, %v1291
  %v1293 = vsel %vm1199, %v1292, %v1288
  %v1294 = vlaneseq
  %v1295 = vshrl.u32 %v1294, 7
  %v1296 = vsub.s32 %v1201, %v1295
  %v1297 = vrot.slane %v998, %v1296
  %v1298 = vsel %vm1206, %v1297, %v1293
  %v1299 = vlaneseq
  %v1300 = vshrl.u32 %v1299, 7
  %v1301 = vsub.s32 %v1208, %v1300
  %v1302 = vrot.slane %v1000, %v1301
  %v1303 = vsel %vm1213, %v1302, %v1298
  %v1304 = vlaneseq
  %v1305 = vshrl.u32 %v1304, 7
  %v1306 = vsub.s32 %v1215, %v1305
  %v1307 = vrot.slane %v1002, %v1306
  %v1308 = vsel %vm1220, %v1307, %v1303
  %v1309 = vlaneseq
  %v1310 = vshrl.u32 %v1309, 7
  %v1311 = vsub.s32 %v1222, %v1310
  %v1312 = vrot.slane %v1004, %v1311
  %v1313 = vsel %vm1227, %v1312, %v1308
  %v1314 = vlaneseq
  %v1315 = vshrl.u32 %v1314, 7
  %v1316 = vsub.s32 %v1229, %v1315
  %v1317 = vrot.slane %v1006, %v1316
  %v1318 = vsel %vm1234, %v1317, %v1313
  %v1319 = vlaneseq
  %v1320 = vshrl.u32 %v1319, 7
  %v1321 = vsub.s32 %v1236, %v1320
  %v1322 = vrot.slane %v1008, %v1321
  %v1323 = vsel %vm1241, %v1322, %v1318
  %v1324 = vlaneseq
  %v1325 = vshrl.u32 %v1324, 7
  %v1326 = vsub.s32 %v1243, %v1325
  %v1327 = vrot.slane %v1010, %v1326
  %v1328 = vsel %vm1248, %v1327, %v1323
  %v1329 = vlaneseq
  %v1330 = vshrl.u32 %v1329, 7
  %v1331 = vsub.s32 %v1140, %v1330
  %v1332 = vrot.slane %v1012, %v1331
  %v1333 = vlaneseq
  %v1334 = vshrl.u32 %v1333, 7
  %v1335 = vsub.s32 %v1145, %v1334
  %v1336 = vrot.slane %v1014, %v1335
  %v1337 = vsel %vm1150, %v1336, %v1332
  %v1338 = vlaneseq
  %v1339 = vshrl.u32 %v1338, 7
  %v1340 = vsub.s32 %v1152, %v1339
  %v1341 = vrot.slane %v1016, %v1340
  %v1342 = vsel %vm1157, %v1341, %v1337
  %v1343 = vlaneseq
  %v1344 = vshrl.u32 %v1343, 7
  %v1345 = vsub.s32 %v1159, %v1344
  %v1346 = vrot.slane %v1018, %v1345
  %v1347 = vsel %vm1164, %v1346, %v1342
  %v1348 = vlaneseq
  %v1349 = vshrl.u32 %v1348, 7
  %v1350 = vsub.s32 %v1166, %v1349
  %v1351 = vrot.slane %v1020, %v1350
  %v1352 = vsel %vm1171, %v1351, %v1347
  %v1353 = vlaneseq
  %v1354 = vshrl.u32 %v1353, 7
  %v1355 = vsub.s32 %v1173, %v1354
  %v1356 = vrot.slane %v1022, %v1355
  %v1357 = vsel %vm1178, %v1356, %v1352
  %v1358 = vlaneseq
  %v1359 = vshrl.u32 %v1358, 7
  %v1360 = vsub.s32 %v1180, %v1359
  %v1361 = vrot.slane %v1024, %v1360
  %v1362 = vsel %vm1185, %v1361, %v1357
  %v1363 = vlaneseq
  %v1364 = vshrl.u32 %v1363, 7
  %v1365 = vsub.s32 %v1187, %v1364
  %v1366 = vrot.slane %v1026, %v1365
  %v1367 = vsel %vm1192, %v1366, %v1362
  %v1368 = vlaneseq
  %v1369 = vshrl.u32 %v1368, 7
  %v1370 = vsub.s32 %v1194, %v1369
  %v1371 = vrot.slane %v1028, %v1370
  %v1372 = vsel %vm1199, %v1371, %v1367
  %v1373 = vlaneseq
  %v1374 = vshrl.u32 %v1373, 7
  %v1375 = vsub.s32 %v1201, %v1374
  %v1376 = vrot.slane %v1030, %v1375
  %v1377 = vsel %vm1206, %v1376, %v1372
  %v1378 = vlaneseq
  %v1379 = vshrl.u32 %v1378, 7
  %v1380 = vsub.s32 %v1208, %v1379
  %v1381 = vrot.slane %v1032, %v1380
  %v1382 = vsel %vm1213, %v1381, %v1377
  %v1383 = vlaneseq
  %v1384 = vshrl.u32 %v1383, 7
  %v1385 = vsub.s32 %v1215, %v1384
  %v1386 = vrot.slane %v1034, %v1385
  %v1387 = vsel %vm1220, %v1386, %v1382
  %v1388 = vlaneseq
  %v1389 = vshrl.u32 %v1388, 7
  %v1390 = vsub.s32 %v1222, %v1389
  %v1391 = vrot.slane %v1036, %v1390
  %v1392 = vsel %vm1227, %v1391, %v1387
  %v1393 = vlaneseq
  %v1394 = vshrl.u32 %v1393, 7
  %v1395 = vsub.s32 %v1229, %v1394
  %v1396 = vrot.slane %v1038, %v1395
  %v1397 = vsel %vm1234, %v1396, %v1392
  %v1398 = vlaneseq
  %v1399 = vshrl.u32 %v1398, 7
  %v1400 = vsub.s32 %v1236, %v1399
  %v1401 = vrot.slane %v1040, %v1400
  %v1402 = vsel %vm1241, %v1401, %v1397
  %v1403 = vlaneseq
  %v1404 = vshrl.u32 %v1403, 7
  %v1405 = vsub.s32 %v1243, %v1404
  %v1406 = vrot.slane %v1042, %v1405
  %v1407 = vsel %vm1248, %v1406, %v1402
  %v1408 = vlaneseq
  %v1409 = vshrl.u32 %v1408, 7
  %v1410 = vsub.s32 %v1140, %v1409
  %v1411 = vrot.slane %v1044, %v1410
  %v1412 = vlaneseq
  %v1413 = vshrl.u32 %v1412, 7
  %v1414 = vsub.s32 %v1145, %v1413
  %v1415 = vrot.slane %v1046, %v1414
  %v1416 = vsel %vm1150, %v1415, %v1411
  %v1417 = vlaneseq
  %v1418 = vshrl.u32 %v1417, 7
  %v1419 = vsub.s32 %v1152, %v1418
  %v1420 = vrot.slane %v1048, %v1419
  %v1421 = vsel %vm1157, %v1420, %v1416
  %v1422 = vlaneseq
  %v1423 = vshrl.u32 %v1422, 7
  %v1424 = vsub.s32 %v1159, %v1423
  %v1425 = vrot.slane %v1050, %v1424
  %v1426 = vsel %vm1164, %v1425, %v1421
  %v1427 = vlaneseq
  %v1428 = vshrl.u32 %v1427, 7
  %v1429 = vsub.s32 %v1166, %v1428
  %v1430 = vrot.slane %v1052, %v1429
  %v1431 = vsel %vm1171, %v1430, %v1426
  %v1432 = vlaneseq
  %v1433 = vshrl.u32 %v1432, 7
  %v1434 = vsub.s32 %v1173, %v1433
  %v1435 = vrot.slane %v1054, %v1434
  %v1436 = vsel %vm1178, %v1435, %v1431
  %v1437 = vlaneseq
  %v1438 = vshrl.u32 %v1437, 7
  %v1439 = vsub.s32 %v1180, %v1438
  %v1440 = vrot.slane %v1056, %v1439
  %v1441 = vsel %vm1185, %v1440, %v1436
  %v1442 = vlaneseq
  %v1443 = vshrl.u32 %v1442, 7
  %v1444 = vsub.s32 %v1187, %v1443
  %v1445 = vrot.slane %v1058, %v1444
  %v1446 = vsel %vm1192, %v1445, %v1441
  %v1447 = vlaneseq
  %v1448 = vshrl.u32 %v1447, 7
  %v1449 = vsub.s32 %v1194, %v1448
  %v1450 = vrot.slane %v1060, %v1449
  %v1451 = vsel %vm1199, %v1450, %v1446
  %v1452 = vlaneseq
  %v1453 = vshrl.u32 %v1452, 7
  %v1454 = vsub.s32 %v1201, %v1453
  %v1455 = vrot.slane %v1062, %v1454
  %v1456 = vsel %vm1206, %v1455, %v1451
  %v1457 = vlaneseq
  %v1458 = vshrl.u32 %v1457, 7
  %v1459 = vsub.s32 %v1208, %v1458
  %v1460 = vrot.slane %v1064, %v1459
  %v1461 = vsel %vm1213, %v1460, %v1456
  %v1462 = vlaneseq
  %v1463 = vshrl.u32 %v1462, 7
  %v1464 = vsub.s32 %v1215, %v1463
  %v1465 = vrot.slane %v1066, %v1464
  %v1466 = vsel %vm1220, %v1465, %v1461
  %v1467 = vlaneseq
  %v1468 = vshrl.u32 %v1467, 7
  %v1469 = vsub.s32 %v1222, %v1468
  %v1470 = vrot.slane %v1068, %v1469
  %v1471 = vsel %vm1227, %v1470, %v1466
  %v1472 = vlaneseq
  %v1473 = vshrl.u32 %v1472, 7
  %v1474 = vsub.s32 %v1229, %v1473
  %v1475 = vrot.slane %v1070, %v1474
  %v1476 = vsel %vm1234, %v1475, %v1471
  %v1477 = vlaneseq
  %v1478 = vshrl.u32 %v1477, 7
  %v1479 = vsub.s32 %v1236, %v1478
  %v1480 = vrot.slane %v1072, %v1479
  %v1481 = vsel %vm1241, %v1480, %v1476
  %v1482 = vlaneseq
  %v1483 = vshrl.u32 %v1482, 7
  %v1484 = vsub.s32 %v1243, %v1483
  %v1485 = vrot.slane %v1074, %v1484
  %v1486 = vsel %vm1248, %v1485, %v1481
  %vm1487 = vcmask 1041409
  %v1488 = vsel %vm1487, %v1328, %v1249
  %vm1489 = vcmask 1042434
  %v1490 = vsel %vm1489, %v1407, %v1488
  %vm1491 = vcmask 1043459
  %v1492 = vsel %vm1491, %v1486, %v1490
  %v1494 = vmin.f32 %v946, %v1492
  %1495 = vst [vmem:[%s945] sm:$0xf] %v1494
  %s1496 = sshra.s32 %s942, 7
  %s1497 = sand.u32 %s942, 127
  %s1498 = scalar_lea.vmem [#allocation2], %s1496
  %v1499 = vld [vmem:[%s1498] sm:$0xf]
  %v1500 = vmin.f32 %v179, %v184
  %v1501 = vmin.f32 %v1500, %v189
  %v1502 = vmin.f32 %v1501, %v194
  %v1503 = vmin.f32 %v1502, %v199
  %v1504 = vmin.f32 %v1503, %v204
  %v1505 = vmin.f32 %v1504, %v209
  %v1506 = vmin.f32 %v1505, %v214
  %v1507 = vmin.f32 %v1506, %v219
  %v1508 = vmin.f32 %v1507, %v224
  %v1509 = vmin.f32 %v1508, %v229
  %v1510 = vmin.f32 %v1509, %v234
  %v1511 = vmin.f32 %v1510, %v239
  %v1512 = vmin.f32 %v1511, %v244
  %v1513 = vmin.f32 %v1512, %v249
  %v1514 = vmin.f32 %v1513, %v254
  %v1515 = vrot.slane %v1514, 4
  %v1516 = vmin.f32 %v1514, %v1515
  %v1517 = vrot.slane %v1516, 2
  %v1518 = vmin.f32 %v1516, %v1517
  %v1519 = vrot.slane %v1518, 1
  %v1520 = vmin.f32 %v1518, %v1519
  %v1521 = vmin.f32 %v407, %v412
  %v1522 = vmin.f32 %v1521, %v417
  %v1523 = vmin.f32 %v1522, %v422
  %v1524 = vmin.f32 %v1523, %v427
  %v1525 = vmin.f32 %v1524, %v432
  %v1526 = vmin.f32 %v1525, %v437
  %v1527 = vmin.f32 %v1526, %v442
  %v1528 = vmin.f32 %v1527, %v447
  %v1529 = vmin.f32 %v1528, %v452
  %v1530 = vmin.f32 %v1529, %v457
  %v1531 = vmin.f32 %v1530, %v462
  %v1532 = vmin.f32 %v1531, %v467
  %v1533 = vmin.f32 %v1532, %v472
  %v1534 = vmin.f32 %v1533, %v477
  %v1535 = vmin.f32 %v1534, %v482
  %v1536 = vrot.slane %v1535, 4
  %v1537 = vmin.f32 %v1535, %v1536
  %v1538 = vrot.slane %v1537, 2
  %v1539 = vmin.f32 %v1537, %v1538
  %v1540 = vrot.slane %v1539, 1
  %v1541 = vmin.f32 %v1539, %v1540
  %v1542 = vmin.f32 %v635, %v640
  %v1543 = vmin.f32 %v1542, %v645
  %v1544 = vmin.f32 %v1543, %v650
  %v1545 = vmin.f32 %v1544, %v655
  %v1546 = vmin.f32 %v1545, %v660
  %v1547 = vmin.f32 %v1546, %v665
  %v1548 = vmin.f32 %v1547, %v670
  %v1549 = vmin.f32 %v1548, %v675
  %v1550 = vmin.f32 %v1549, %v680
  %v1551 = vmin.f32 %v1550, %v685
  %v1552 = vmin.f32 %v1551, %v690
  %v1553 = vmin.f32 %v1552, %v695
  %v1554 = vmin.f32 %v1553, %v700
  %v1555 = vmin.f32 %v1554, %v705
  %v1556 = vmin.f32 %v1555, %v710
  %v1557 = vrot.slane %v1556, 4
  %v1558 = vmin.f32 %v1556, %v1557
  %v1559 = vrot.slane %v1558, 2
  %v1560 = vmin.f32 %v1558, %v1559
  %v1561 = vrot.slane %v1560, 1
  %v1562 = vmin.f32 %v1560, %v1561
  %v1563 = vmin.f32 %v863, %v868
  %v1564 = vmin.f32 %v1563, %v873
  %v1565 = vmin.f32 %v1564, %v878
  %v1566 = vmin.f32 %v1565, %v883
  %v1567 = vmin.f32 %v1566, %v888
  %v1568 = vmin.f32 %v1567, %v893
  %v1569 = vmin.f32 %v1568, %v898
  %v1570 = vmin.f32 %v1569, %v903
  %v1571 = vmin.f32 %v1570, %v908
  %v1572 = vmin.f32 %v1571, %v913
  %v1573 = vmin.f32 %v1572, %v918
  %v1574 = vmin.f32 %v1573, %v923
  %v1575 = vmin.f32 %v1574, %v928
  %v1576 = vmin.f32 %v1575, %v933
  %v1577 = vmin.f32 %v1576, %v938
  %v1578 = vrot.slane %v1577, 4
  %v1579 = vmin.f32 %v1577, %v1578
  %v1580 = vrot.slane %v1579, 2
  %v1581 = vmin.f32 %v1579, %v1580
  %v1582 = vrot.slane %v1581, 1
  %v1583 = vmin.f32 %v1581, %v1582
  %v1588 = vsel %vm1487, %v1541, %v1520
  %v1589 = vsel %vm1489, %v1562, %v1588
  %v1590 = vsel %vm1491, %v1583, %v1589
  %v1592 = vmin.f32 %v1499, %v1590
  %1593 = vst [vmem:[%s1498] sm:$0xf] %v1592
  // Predicated region
  $region14: #{chamfer_loss.1} parent=0 // pred_check
    _
  $region15: #{chamfer_loss.1} parent=0 // pred_check_branch
    %1595 = sbr.rel (%p13) target = $region17
  $region16: #{chamfer_loss.1} parent=0 // pred_region
    %v1596 = vld [vmem:[#allocation2] sm:$0xf]
    %v1597 = vld [vmem:[#allocation3] sm:$0xf]
    %v1598 = vadd.f32 %v1596, %v1597
    %v1599 = vmul.f32 %v1598, 0.5
    %1600 = vst [vmem:[%s2] sm:$0xf] %v1599
  $region17: #{chamfer_loss.1} parent=0 // pred_fallthru
    _
  // Predicated region
  $region18: #{chamfer_loss.1} parent=0 // pred_check
    _
  $region19: #{chamfer_loss.1} parent=0 // pred_check_branch
    %1602 = sbr.rel (0) target = $region21
  $region20: #{chamfer_loss.1} parent=0 // pred_region
    _
  $region21: #{chamfer_loss.1} parent=0 // pred_fallthru
    _
  // Predicated region
  $region22: #{chamfer_loss.1} parent=0 // pred_check
    _
  $region23: #{chamfer_loss.1} parent=0 // pred_check_branch
    %1604 = sbr.rel (0) target = $region25
  $region24: #{chamfer_loss.1} parent=0 // pred_region
    _
  $region25: #{chamfer_loss.1} parent=0 // pred_fallthru
    _

</llo_original>
